<compile_context>
chip_gen: v5e
topology: v5e:2x2
jax: 0.10.0
libtpu: 0.0.40
codegen_flags: <defaults>
</compile_context>

<pallas_src>
import functools

import jax
import jax.numpy as jnp
from jax.experimental import pallas as pl
from jax.experimental.pallas import tpu as pltpu


def _conv_bias_prelu_kernel(x_ref, w_ref, b_ref, a_ref, o_ref, *,
                            n_batch, cout, ksize, wp, span):
    """Fused conv (K*K accumulated shifted matmuls) + bias + PReLU.

    x_ref : (Cin, B*span + tail)  replicate-padded input; image b's padded
                                  plane, rows flattened with stride wp, starts
                                  at lane offset b*span (128-aligned).
    w_ref : (K*K, Cout, Cin)      conv weight, tap-major (ky, kx).
    b_ref : (Cout, 1)             conv bias (f32).
    a_ref : (1,)                  PReLU alpha (SMEM scalar, f32).
    o_ref : (B, Cout, span)       conv+bias+PReLU output (pre-shuffle, still
                                  padded width wp + lane pad; wrapper crops).
    """
    lanes = n_batch * span
    alpha = a_ref[0]
    # Bias folded into the accumulator init: single hoisted broadcast.
    acc = jnp.broadcast_to(b_ref[...], (cout, lanes)).astype(jnp.float32)
    for ky in range(ksize):
        for kx in range(ksize):
            tap = ky * ksize + kx
            shift = ky * wp + kx
            # Shifted lane slice of the whole (batch-merged) input: because the
            # per-image lane stride equals the output span, the same static
            # shift is correct for every image simultaneously.
            x_tap = x_ref[:, shift:shift + lanes]            # (Cin, B*span)
            acc = acc + jnp.dot(w_ref[tap], x_tap,
                                preferred_element_type=jnp.float32)
    y = jnp.where(acc >= 0, acc, alpha * acc)                # PReLU (f32)
    for b in range(n_batch):                                 # lane-dense stores
        o_ref[b] = y[:, b * span:(b + 1) * span].astype(o_ref.dtype)


def pixel_shuffle_block(x_nchw, conv_w, conv_b, prelu_alpha, scale,
                        compute_dtype=jnp.bfloat16):
    """Forward pass of PixelShuffleBlock (conv 'same'/replicate -> PixelShuffle -> PReLU).

    x_nchw      : (B, Cin, H, W) float32, NCHW (PyTorch layout)
    conv_w      : (Cout_conv, Cin, K, K) with Cout_conv = channels * scale**2
    conv_b      : (Cout_conv,)
    prelu_alpha : scalar PReLU weight (num_parameters=1)
    compute_dtype: matmul-operand dtype (bf16 default for v6e/v7x; accumulate,
                   bias and PReLU stay f32).
    returns     : (B, channels, H*scale, W*scale) float32, NCHW
    """
    B, Cin, H, W = x_nchw.shape
    Cout, Cin_w, K, K2 = conv_w.shape
    assert Cin_w == Cin and K == K2 and K % 2 == 1
    pad = (K - 1) // 2                        # padding='same', stride=1
    Hp, Wp = H + 2 * pad, W + 2 * pad
    Lraw = Hp * Wp                            # flat length of one padded plane
    span = ((Lraw + 127) // 128) * 128        # per-image lane stride (128-aligned)
    max_shift = (K - 1) * (Wp + 1)
    tail = ((max_shift + 127) // 128) * 128 if max_shift else 0
    # Shifted-slice im2col invariants: every tap read for a *valid* output
    # column (y < H, x < W) lands inside that image's own padded plane
    # [0, Lraw) (max read index is exactly Lraw-1); the wrapped columns
    # x in [W, Wp) and the lane pad [H*Wp, span) are garbage by construction
    # and MUST be discarded by the crops below.
    assert max_shift + (H - 1) * Wp + (W - 1) <= Lraw - 1
    assert span >= Lraw and span >= H * Wp

    # --- glue (tiny): replicate pad, flatten rows, batch -> lane layout ---
    xp = jnp.pad(x_nchw, ((0, 0), (0, 0), (pad, pad), (pad, pad)), mode="edge")
    xpf = jnp.pad(xp.reshape(B, Cin, Lraw),
                  ((0, 0), (0, 0), (0, span - Lraw)))        # (B, Cin, span)
    x2 = jnp.transpose(xpf, (1, 0, 2)).reshape(Cin, B * span)
    x2 = jnp.pad(x2, ((0, 0), (0, tail))).astype(compute_dtype)

    wk = jnp.transpose(conv_w, (2, 3, 0, 1)).reshape(K * K, Cout, Cin)
    wk = wk.astype(compute_dtype)                            # tap-major weight
    b2 = conv_b.reshape(Cout, 1).astype(jnp.float32)
    alpha_arr = jnp.asarray(prelu_alpha, dtype=jnp.float32).reshape((1,))

    kernel = functools.partial(_conv_bias_prelu_kernel, n_batch=B, cout=Cout,
                               ksize=K, wp=Wp, span=span)

    # Single grid-less invocation: the whole problem (<200 KB) lives in VMEM.
    y_flat = pl.pallas_call(
        kernel,
        out_shape=jax.ShapeDtypeStruct((B, Cout, span), jnp.float32),
        in_specs=[
            pl.BlockSpec(memory_space=pltpu.MemorySpace.VMEM),   # x2
            pl.BlockSpec(memory_space=pltpu.MemorySpace.VMEM),   # weights
            pl.BlockSpec(memory_space=pltpu.MemorySpace.VMEM),   # bias
            pl.BlockSpec(memory_space=pltpu.MemorySpace.SMEM),   # alpha scalar
        ],
        out_specs=pl.BlockSpec(memory_space=pltpu.MemorySpace.VMEM),
    )(x2, wk, b2, alpha_arr)

    # --- glue: crop lane pad + padded width, then PixelShuffle permutation ---
    y = y_flat[:, :, :H * Wp].reshape(B, Cout, H, Wp)[:, :, :, :W]
    r = scale
    C = Cout // (r * r)
    y = y.reshape(B, C, r, r, H, W)
    y = jnp.transpose(y, (0, 1, 4, 2, 5, 3))                 # (B, C, H, r, W, r)
    return y.reshape(B, C, H * r, W * r)


def _reference_forward(x_nchw, conv_w, conv_b, prelu_alpha, scale):
    """Pure-JAX reference mirroring the PyTorch module."""
    K = conv_w.shape[2]
    pad = (K - 1) // 2
    xp = jnp.pad(x_nchw, ((0, 0), (0, 0), (pad, pad), (pad, pad)), mode="edge")
    y = jax.lax.conv_general_dilated(
        xp, conv_w, window_strides=(1, 1), padding="VALID",
        dimension_numbers=("NCHW", "OIHW", "NCHW"))
    y = y + conv_b[None, :, None, None]
    B, Crr, H, W = y.shape
    r = scale
    C = Crr // (r * r)
    y = y.reshape(B, C, r, r, H, W).transpose(0, 1, 4, 2, 5, 3)
    y = y.reshape(B, C, H * r, W * r)
    return jnp.where(y >= 0, y, prelu_alpha * y)


if __name__ == "__main__":
    # Module config (small, consistent with the forward pass):
    scale = 2
    in_channels = 4
    channels = 4
    kernel_size = 3
    cout_conv = channels * scale ** 2  # 16

    B, H, W = 2, 16, 16

    key = jax.random.PRNGKey(0)
    kx_, kw_, kb_ = jax.random.split(key, 3)
    x = jax.random.normal(kx_, (B, in_channels, H, W), dtype=jnp.float32)
    conv_w = 0.1 * jax.random.normal(
        kw_, (cout_conv, in_channels, kernel_size, kernel_size),
        dtype=jnp.float32)
    conv_b = 0.1 * jax.random.normal(kb_, (cout_conv,), dtype=jnp.float32)
    prelu_alpha = jnp.float32(0.25)  # nn.PReLU default init

    ref = jax.block_until_ready(
        _reference_forward(x, conv_w, conv_b, prelu_alpha, scale))

    fwd = jax.jit(pixel_shuffle_block,
                  static_argnames=("scale", "compute_dtype"))

    # f32-operand path: exactness check with tight tolerance.
    out_f32 = jax.block_until_ready(
        fwd(x, conv_w, conv_b, prelu_alpha, scale=scale,
            compute_dtype=jnp.float32))
    assert out_f32.shape == (B, channels, H * scale, W * scale), out_f32.shape
    err_f32 = float(jnp.max(jnp.abs(out_f32 - ref)))
    assert jnp.allclose(out_f32, ref, atol=1e-4, rtol=1e-4), err_f32

    # bf16-operand path (default, for v6e/v7x): looser tolerance.
    out_bf16 = jax.block_until_ready(
        fwd(x, conv_w, conv_b, prelu_alpha, scale=scale))
    assert out_bf16.shape == (B, channels, H * scale, W * scale), out_bf16.shape
    err_bf16 = float(jnp.max(jnp.abs(out_bf16 - ref)))
    assert jnp.allclose(out_bf16, ref, atol=5e-2, rtol=5e-2), err_bf16

    print("KERNEL_OK")
</pallas_src>

<mosaic_0001>
module attributes {stable_mosaic.version = 11 : i64} {
  func.func @_conv_bias_prelu_kernel(%arg0: memref<4x896xf32, #tpu.memory_space<vmem>>, %arg1: memref<9x16x4xf32, #tpu.memory_space<vmem>>, %arg2: memref<16x1xf32, #tpu.memory_space<vmem>>, %arg3: memref<1xf32, #tpu.memory_space<smem>>, %arg4: memref<2x16x384xf32, #tpu.memory_space<vmem>>) attributes {dimension_semantics = [], scalar_prefetch = 0 : i64, scratch_operands = 0 : i64, tpu.core_type = #tpu.core_type<tc>} {
    %c0 = arith.constant 0 : index
    %0 = memref.load %arg3[%c0] : memref<1xf32, #tpu.memory_space<smem>>
    %c0_0 = arith.constant 0 : index
    %c0_1 = arith.constant 0 : index
    %1 = vector.load %arg2[%c0_0, %c0_1] : memref<16x1xf32, #tpu.memory_space<vmem>>, vector<16x1xf32>
    %2 = vector.shape_cast %1 : vector<16x1xf32> to vector<16x1xf32>
    %3 = vector.broadcast %2 : vector<16x1xf32> to vector<16x768xf32>
    %c0_2 = arith.constant 0 : index
    %c0_3 = arith.constant 0 : index
    %4 = vector.load %arg0[%c0_2, %c0_3] : memref<4x896xf32, #tpu.memory_space<vmem>>, vector<4x768xf32>
    %c0_4 = arith.constant 0 : index
    %c0_5 = arith.constant 0 : index
    %c0_6 = arith.constant 0 : index
    %5 = vector.load %arg1[%c0_4, %c0_5, %c0_6] : memref<9x16x4xf32, #tpu.memory_space<vmem>>, vector<1x16x4xf32>
    %6 = vector.shape_cast %5 : vector<1x16x4xf32> to vector<16x4xf32>
    %cst = arith.constant dense<0.000000e+00> : vector<16x768xf32>
    %7 = tpu.matmul %6, %4, %cst {dimension_numbers = #tpu.dot_dimension_numbers<[1], [0], [0], [1], [0, 0, 1, 1], [], []>} : vector<16x4xf32>, vector<4x768xf32>, vector<16x768xf32> -> vector<16x768xf32>
    %8 = arith.addf %3, %7 : vector<16x768xf32>
    %c0_7 = arith.constant 0 : index
    %c1 = arith.constant 1 : index
    %9 = vector.load %arg0[%c0_7, %c1] : memref<4x896xf32, #tpu.memory_space<vmem>>, vector<4x768xf32>
    %c1_8 = arith.constant 1 : index
    %c0_9 = arith.constant 0 : index
    %c0_10 = arith.constant 0 : index
    %10 = vector.load %arg1[%c1_8, %c0_9, %c0_10] : memref<9x16x4xf32, #tpu.memory_space<vmem>>, vector<1x16x4xf32>
    %11 = vector.shape_cast %10 : vector<1x16x4xf32> to vector<16x4xf32>
    %cst_11 = arith.constant dense<0.000000e+00> : vector<16x768xf32>
    %12 = tpu.matmul %11, %9, %cst_11 {dimension_numbers = #tpu.dot_dimension_numbers<[1], [0], [0], [1], [0, 0, 1, 1], [], []>} : vector<16x4xf32>, vector<4x768xf32>, vector<16x768xf32> -> vector<16x768xf32>
    %13 = arith.addf %8, %12 : vector<16x768xf32>
    %c0_12 = arith.constant 0 : index
    %c2 = arith.constant 2 : index
    %14 = vector.load %arg0[%c0_12, %c2] : memref<4x896xf32, #tpu.memory_space<vmem>>, vector<4x768xf32>
    %c2_13 = arith.constant 2 : index
    %c0_14 = arith.constant 0 : index
    %c0_15 = arith.constant 0 : index
    %15 = vector.load %arg1[%c2_13, %c0_14, %c0_15] : memref<9x16x4xf32, #tpu.memory_space<vmem>>, vector<1x16x4xf32>
    %16 = vector.shape_cast %15 : vector<1x16x4xf32> to vector<16x4xf32>
    %cst_16 = arith.constant dense<0.000000e+00> : vector<16x768xf32>
    %17 = tpu.matmul %16, %14, %cst_16 {dimension_numbers = #tpu.dot_dimension_numbers<[1], [0], [0], [1], [0, 0, 1, 1], [], []>} : vector<16x4xf32>, vector<4x768xf32>, vector<16x768xf32> -> vector<16x768xf32>
    %18 = arith.addf %13, %17 : vector<16x768xf32>
    %c0_17 = arith.constant 0 : index
    %c18 = arith.constant 18 : index
    %19 = vector.load %arg0[%c0_17, %c18] : memref<4x896xf32, #tpu.memory_space<vmem>>, vector<4x768xf32>
    %c3 = arith.constant 3 : index
    %c0_18 = arith.constant 0 : index
    %c0_19 = arith.constant 0 : index
    %20 = vector.load %arg1[%c3, %c0_18, %c0_19] : memref<9x16x4xf32, #tpu.memory_space<vmem>>, vector<1x16x4xf32>
    %21 = vector.shape_cast %20 : vector<1x16x4xf32> to vector<16x4xf32>
    %cst_20 = arith.constant dense<0.000000e+00> : vector<16x768xf32>
    %22 = tpu.matmul %21, %19, %cst_20 {dimension_numbers = #tpu.dot_dimension_numbers<[1], [0], [0], [1], [0, 0, 1, 1], [], []>} : vector<16x4xf32>, vector<4x768xf32>, vector<16x768xf32> -> vector<16x768xf32>
    %23 = arith.addf %18, %22 : vector<16x768xf32>
    %c0_21 = arith.constant 0 : index
    %c19 = arith.constant 19 : index
    %24 = vector.load %arg0[%c0_21, %c19] : memref<4x896xf32, #tpu.memory_space<vmem>>, vector<4x768xf32>
    %c4 = arith.constant 4 : index
    %c0_22 = arith.constant 0 : index
    %c0_23 = arith.constant 0 : index
    %25 = vector.load %arg1[%c4, %c0_22, %c0_23] : memref<9x16x4xf32, #tpu.memory_space<vmem>>, vector<1x16x4xf32>
    %26 = vector.shape_cast %25 : vector<1x16x4xf32> to vector<16x4xf32>
    %cst_24 = arith.constant dense<0.000000e+00> : vector<16x768xf32>
    %27 = tpu.matmul %26, %24, %cst_24 {dimension_numbers = #tpu.dot_dimension_numbers<[1], [0], [0], [1], [0, 0, 1, 1], [], []>} : vector<16x4xf32>, vector<4x768xf32>, vector<16x768xf32> -> vector<16x768xf32>
    %28 = arith.addf %23, %27 : vector<16x768xf32>
    %c0_25 = arith.constant 0 : index
    %c20 = arith.constant 20 : index
    %29 = vector.load %arg0[%c0_25, %c20] : memref<4x896xf32, #tpu.memory_space<vmem>>, vector<4x768xf32>
    %c5 = arith.constant 5 : index
    %c0_26 = arith.constant 0 : index
    %c0_27 = arith.constant 0 : index
    %30 = vector.load %arg1[%c5, %c0_26, %c0_27] : memref<9x16x4xf32, #tpu.memory_space<vmem>>, vector<1x16x4xf32>
    %31 = vector.shape_cast %30 : vector<1x16x4xf32> to vector<16x4xf32>
    %cst_28 = arith.constant dense<0.000000e+00> : vector<16x768xf32>
    %32 = tpu.matmul %31, %29, %cst_28 {dimension_numbers = #tpu.dot_dimension_numbers<[1], [0], [0], [1], [0, 0, 1, 1], [], []>} : vector<16x4xf32>, vector<4x768xf32>, vector<16x768xf32> -> vector<16x768xf32>
    %33 = arith.addf %28, %32 : vector<16x768xf32>
    %c0_29 = arith.constant 0 : index
    %c36 = arith.constant 36 : index
    %34 = vector.load %arg0[%c0_29, %c36] : memref<4x896xf32, #tpu.memory_space<vmem>>, vector<4x768xf32>
    %c6 = arith.constant 6 : index
    %c0_30 = arith.constant 0 : index
    %c0_31 = arith.constant 0 : index
    %35 = vector.load %arg1[%c6, %c0_30, %c0_31] : memref<9x16x4xf32, #tpu.memory_space<vmem>>, vector<1x16x4xf32>
    %36 = vector.shape_cast %35 : vector<1x16x4xf32> to vector<16x4xf32>
    %cst_32 = arith.constant dense<0.000000e+00> : vector<16x768xf32>
    %37 = tpu.matmul %36, %34, %cst_32 {dimension_numbers = #tpu.dot_dimension_numbers<[1], [0], [0], [1], [0, 0, 1, 1], [], []>} : vector<16x4xf32>, vector<4x768xf32>, vector<16x768xf32> -> vector<16x768xf32>
    %38 = arith.addf %33, %37 : vector<16x768xf32>
    %c0_33 = arith.constant 0 : index
    %c37 = arith.constant 37 : index
    %39 = vector.load %arg0[%c0_33, %c37] : memref<4x896xf32, #tpu.memory_space<vmem>>, vector<4x768xf32>
    %c7 = arith.constant 7 : index
    %c0_34 = arith.constant 0 : index
    %c0_35 = arith.constant 0 : index
    %40 = vector.load %arg1[%c7, %c0_34, %c0_35] : memref<9x16x4xf32, #tpu.memory_space<vmem>>, vector<1x16x4xf32>
    %41 = vector.shape_cast %40 : vector<1x16x4xf32> to vector<16x4xf32>
    %cst_36 = arith.constant dense<0.000000e+00> : vector<16x768xf32>
    %42 = tpu.matmul %41, %39, %cst_36 {dimension_numbers = #tpu.dot_dimension_numbers<[1], [0], [0], [1], [0, 0, 1, 1], [], []>} : vector<16x4xf32>, vector<4x768xf32>, vector<16x768xf32> -> vector<16x768xf32>
    %43 = arith.addf %38, %42 : vector<16x768xf32>
    %c0_37 = arith.constant 0 : index
    %c38 = arith.constant 38 : index
    %44 = vector.load %arg0[%c0_37, %c38] : memref<4x896xf32, #tpu.memory_space<vmem>>, vector<4x768xf32>
    %c8 = arith.constant 8 : index
    %c0_38 = arith.constant 0 : index
    %c0_39 = arith.constant 0 : index
    %45 = vector.load %arg1[%c8, %c0_38, %c0_39] : memref<9x16x4xf32, #tpu.memory_space<vmem>>, vector<1x16x4xf32>
    %46 = vector.shape_cast %45 : vector<1x16x4xf32> to vector<16x4xf32>
    %cst_40 = arith.constant dense<0.000000e+00> : vector<16x768xf32>
    %47 = tpu.matmul %46, %44, %cst_40 {dimension_numbers = #tpu.dot_dimension_numbers<[1], [0], [0], [1], [0, 0, 1, 1], [], []>} : vector<16x4xf32>, vector<4x768xf32>, vector<16x768xf32> -> vector<16x768xf32>
    %48 = arith.addf %43, %47 : vector<16x768xf32>
    %cst_41 = arith.constant 0.000000e+00 : f32
    %49 = vector.broadcast %cst_41 : f32 to vector<16x768xf32>
    %50 = arith.cmpf oge, %48, %49 : vector<16x768xf32>
    %51 = vector.broadcast %0 : f32 to vector<16x768xf32>
    %52 = arith.mulf %51, %48 : vector<16x768xf32>
    %53 = arith.select %50, %48, %52 : vector<16x768xi1>, vector<16x768xf32>
    %54 = vector.extract_strided_slice %53 {offsets = [0, 0], sizes = [16, 384], strides = [1, 1]} : vector<16x768xf32> to vector<16x384xf32>
    %c0_42 = arith.constant 0 : index
    %c0_43 = arith.constant 0 : index
    %c0_44 = arith.constant 0 : index
    %55 = vector.load %arg4[%c0_42, %c0_43, %c0_44] : memref<2x16x384xf32, #tpu.memory_space<vmem>>, vector<1x16x384xf32>
    %56 = vector.shape_cast %55 : vector<1x16x384xf32> to vector<16x384xf32>
    %57 = vector.shape_cast %54 : vector<16x384xf32> to vector<1x16x384xf32>
    tpu.vector_store %arg4[%c0_42, %c0_43, %c0_44], %57 {strides = array<i32>} : memref<2x16x384xf32, #tpu.memory_space<vmem>>, vector<1x16x384xf32>,
    %58 = vector.extract_strided_slice %53 {offsets = [0, 384], sizes = [16, 384], strides = [1, 1]} : vector<16x768xf32> to vector<16x384xf32>
    %c1_45 = arith.constant 1 : index
    %c0_46 = arith.constant 0 : index
    %c0_47 = arith.constant 0 : index
    %59 = vector.load %arg4[%c1_45, %c0_46, %c0_47] : memref<2x16x384xf32, #tpu.memory_space<vmem>>, vector<1x16x384xf32>
    %60 = vector.shape_cast %59 : vector<1x16x384xf32> to vector<16x384xf32>
    %61 = vector.shape_cast %58 : vector<16x384xf32> to vector<1x16x384xf32>
    tpu.vector_store %arg4[%c1_45, %c0_46, %c0_47], %61 {strides = array<i32>} : memref<2x16x384xf32, #tpu.memory_space<vmem>>, vector<1x16x384xf32>,
    return
  }
}

</mosaic_0001>

<llo_original>
// kernel: pixel_shuffle_block.1
$region0: #{pixel_shuffle_block.1}
  #allocation0 [shape = 'u32[]', space=smem, size = 0x4, offset = 0x4, fixed_abs, tag = 'smem constant byte address 0x4 - core index']
  #allocation1 [shape = 'u32[72,128]{1,0:T(1,128)}', space=vmem, size = 0x9000, scoped, tag = 'internal scratch']
  #allocation2 [shape = 'f32[1]{0:T(128)S(6)}', space=smem, size = 0x200, scoped, tag = 'scoped memory for pixel_shuffle_block.1']
  %s0 = inlined_call_operand.vmem [shape: f32[4,896], index: 0, kind: input, shape index: {}]
  %s1 = inlined_call_operand.vmem [shape: f32[9,16,4], index: 1, kind: input, shape index: {}]
  %s2 = inlined_call_operand.vmem [shape: f32[16,1], index: 2, kind: input, shape index: {}]
  %s3 = inlined_call_operand.<no memory space> [shape: f32[1], index: 3, kind: input, shape index: {}]
  %s4 = inlined_call_operand.vmem [shape: f32[2,16,384], index: 4, kind: output, shape index: {}]
  %s5 = sld [smem:[#allocation0]]
  $region26: #{pixel_shuffle_block.1} parent=0
    _
  %s7 = ssub.s32 1, %s5
  %s8 = scalar_select 0, %s7, %s5
  %9 = sst [smem:[#allocation2]] %s3
  // Predicated region
  $region2: #{pixel_shuffle_block.1} parent=0 // pred_check
    _
  $region3: #{pixel_shuffle_block.1} parent=0 // pred_check_branch
    %11 = sbr.rel (0) target = $region5
  $region4: #{pixel_shuffle_block.1} parent=0 // pred_region
    _
  $region5: #{pixel_shuffle_block.1} parent=0 // pred_fallthru
    _
  // Predicated region
  $region6: #{pixel_shuffle_block.1} parent=0 // pred_check
    _
  $region7: #{pixel_shuffle_block.1} parent=0 // pred_check_branch
    %13 = sbr.rel (0) target = $region9
  $region8: #{pixel_shuffle_block.1} parent=0 // pred_region
    _
  $region9: #{pixel_shuffle_block.1} parent=0 // pred_fallthru
    _
  // Predicated region
  $region10: #{pixel_shuffle_block.1} parent=0 // pred_check
    _
  $region11: #{pixel_shuffle_block.1} parent=0 // pred_check_branch
    %15 = sbr.rel (0) target = $region13
  $region12: #{pixel_shuffle_block.1} parent=0 // pred_region
    _
  $region13: #{pixel_shuffle_block.1} parent=0 // pred_fallthru
    _
  // Predicated region
  $region14: #{pixel_shuffle_block.1} parent=0 // pred_check
    _
  $region15: #{pixel_shuffle_block.1} parent=0 // pred_check_branch
    %17 = sbr.rel (0) target = $region17
  $region16: #{pixel_shuffle_block.1} parent=0 // pred_region
    _
  $region17: #{pixel_shuffle_block.1} parent=0 // pred_fallthru
    _
  %s18 = sld [smem:[#allocation2]]
  %v19 = vld [vmem:[%s2] sm:$0xff]
  %v20 = vld [vmem:[%s2 + $0x8] sm:$0xff]
  %22 = vset.pattern.permute.xlu0 0
  %23 = vperm.xlu0 %22, %v19
  %v24 = vpop.permute.xlu0 %23
  %27 = vset.pattern.permute.xlu0 0
  %28 = vperm.xlu0 %27, %v20
  %v29 = vpop.permute.xlu0 %28
  %v31 = vld [vmem:[%s0] sm:$0xff]
  %v32 = vld [vmem:[%s0 + $0x8] sm:$0xff]
  %v33 = vld [vmem:[%s0 + $0x10] sm:$0xff]
  %v34 = vld [vmem:[%s1] sm:$0xff]
  %v35 = vld [vmem:[%s1 + $0x8] sm:$0xff]
  %39 = vst [vmem:[#allocation1] ss:$2 sm:$0xff] %v31
  %s40 = scalar_lea.vmem [#allocation1], 16
  %41 = vst [vmem:[%s40] ss:$2 sm:$0xff] %v32
  %s42 = scalar_lea.vmem [#allocation1], 32
  %43 = vst [vmem:[%s42] ss:$2 sm:$0xff] %v33
  %v44 = vld.sshfl [vmem:[#allocation1] sm:$0xff pattern:$0x75316420]
  %v45 = vld.sshfl [vmem:[#allocation1 + $0x8] sm:$0xff pattern:$0x75316420]
  %v46 = vld.sshfl [vmem:[#allocation1 + $0x10] sm:$0xff pattern:$0x75316420]
  %v47 = vld.sshfl [vmem:[#allocation1 + $0x18] sm:$0xff pattern:$0x75316420]
  %v48 = vld.sshfl [vmem:[#allocation1 + $0x20] sm:$0xff pattern:$0x75316420]
  %v49 = vld.sshfl [vmem:[#allocation1 + $0x28] sm:$0xff pattern:$0x75316420]
  %vm50 = vcmask 31744
  %v52 = vsel %vm50, %v34, 0
  %v55 = vsel %vm50, %v35, 0
  %vm57 = vcmask 1043456
  %v58 = vsel %vm57, %v44, 0
  %v60 = vsel %vm57, %v45, 0
  %v62 = vsel %vm57, %v46, 0
  %v64 = vsel %vm57, %v47, 0
  %v66 = vsel %vm57, %v48, 0
  %v68 = vsel %vm57, %v49, 0
  %70 = vmatpush.msra.mxu0 0.0
  %71 = vmatpush.msra.mxu0 0.0
  %72 = vmatpush.msra.mxu0 0.0
  %73 = vmatpush.msra.mxu0 0.0
  %74 = vmatpush.msra.mxu0 0.0
  %75 = vmatpush.msra.mxu0 0.0
  %76 = vmatpush.msra.mxu0 0.0
  %77 = vmatpush.msra.mxu0 0.0
  %78 = vmatpush.msra.mxu0 0.0
  %79 = vmatpush.msra.mxu0 0.0
  %80 = vmatpush.msra.mxu0 0.0
  %81 = vmatpush.msra.mxu0 0.0
  %82 = vmatpush.msra.mxu0 0.0
  %83 = vmatpush.msra.mxu0 0.0
  %84 = vmatpush.msra.mxu0 0.0
  %85 = vmatpush.msra.mxu0 %v58
  %86 = vmatmul.f32.gmra.mxu0 %v52
  %v87 = vpop.f32.mrf.mxu0
  %v88 = vadd.f32 0.0, %v87
  %89 = vmatmul.f32.gmra.mxu0 %v55
  %v90 = vpop.f32.mrf.mxu0
  %v91 = vadd.f32 0.0, %v90
  %92 = vdwg.mxu0
  %93 = vmatpush.msra.mxu0 0.0
  %94 = vmatpush.msra.mxu0 0.0
  %95 = vmatpush.msra.mxu0 0.0
  %96 = vmatpush.msra.mxu0 0.0
  %97 = vmatpush.msra.mxu0 0.0
  %98 = vmatpush.msra.mxu0 0.0
  %99 = vmatpush.msra.mxu0 0.0
  %100 = vmatpush.msra.mxu0 0.0
  %101 = vmatpush.msra.mxu0 0.0
  %102 = vmatpush.msra.mxu0 0.0
  %103 = vmatpush.msra.mxu0 0.0
  %104 = vmatpush.msra.mxu0 0.0
  %105 = vmatpush.msra.mxu0 0.0
  %106 = vmatpush.msra.mxu0 0.0
  %107 = vmatpush.msra.mxu0 0.0
  %108 = vmatpush.msra.mxu0 %v60
  %109 = vmatmul.f32.gmra.mxu0 %v52
  %v110 = vpop.f32.mrf.mxu0
  %v111 = vadd.f32 0.0, %v110
  %112 = vmatmul.f32.gmra.mxu0 %v55
  %v113 = vpop.f32.mrf.mxu0
  %v114 = vadd.f32 0.0, %v113
  %115 = vdwg.mxu0
  %116 = vmatpush.msra.mxu0 0.0
  %117 = vmatpush.msra.mxu0 0.0
  %118 = vmatpush.msra.mxu0 0.0
  %119 = vmatpush.msra.mxu0 0.0
  %120 = vmatpush.msra.mxu0 0.0
  %121 = vmatpush.msra.mxu0 0.0
  %122 = vmatpush.msra.mxu0 0.0
  %123 = vmatpush.msra.mxu0 0.0
  %124 = vmatpush.msra.mxu0 0.0
  %125 = vmatpush.msra.mxu0 0.0
  %126 = vmatpush.msra.mxu0 0.0
  %127 = vmatpush.msra.mxu0 0.0
  %128 = vmatpush.msra.mxu0 0.0
  %129 = vmatpush.msra.mxu0 0.0
  %130 = vmatpush.msra.mxu0 0.0
  %131 = vmatpush.msra.mxu0 %v62
  %132 = vmatmul.f32.gmra.mxu0 %v52
  %v133 = vpop.f32.mrf.mxu0
  %v134 = vadd.f32 0.0, %v133
  %135 = vmatmul.f32.gmra.mxu0 %v55
  %v136 = vpop.f32.mrf.mxu0
  %v137 = vadd.f32 0.0, %v136
  %138 = vdwg.mxu0
  %139 = vmatpush.msra.mxu0 0.0
  %140 = vmatpush.msra.mxu0 0.0
  %141 = vmatpush.msra.mxu0 0.0
  %142 = vmatpush.msra.mxu0 0.0
  %143 = vmatpush.msra.mxu0 0.0
  %144 = vmatpush.msra.mxu0 0.0
  %145 = vmatpush.msra.mxu0 0.0
  %146 = vmatpush.msra.mxu0 0.0
  %147 = vmatpush.msra.mxu0 0.0
  %148 = vmatpush.msra.mxu0 0.0
  %149 = vmatpush.msra.mxu0 0.0
  %150 = vmatpush.msra.mxu0 0.0
  %151 = vmatpush.msra.mxu0 0.0
  %152 = vmatpush.msra.mxu0 0.0
  %153 = vmatpush.msra.mxu0 0.0
  %154 = vmatpush.msra.mxu0 %v64
  %155 = vmatmul.f32.gmra.mxu0 %v52
  %v156 = vpop.f32.mrf.mxu0
  %v157 = vadd.f32 0.0, %v156
  %158 = vmatmul.f32.gmra.mxu0 %v55
  %v159 = vpop.f32.mrf.mxu0
  %v160 = vadd.f32 0.0, %v159
  %161 = vdwg.mxu0
  %162 = vmatpush.msra.mxu0 0.0
  %163 = vmatpush.msra.mxu0 0.0
  %164 = vmatpush.msra.mxu0 0.0
  %165 = vmatpush.msra.mxu0 0.0
  %166 = vmatpush.msra.mxu0 0.0
  %167 = vmatpush.msra.mxu0 0.0
  %168 = vmatpush.msra.mxu0 0.0
  %169 = vmatpush.msra.mxu0 0.0
  %170 = vmatpush.msra.mxu0 0.0
  %171 = vmatpush.msra.mxu0 0.0
  %172 = vmatpush.msra.mxu0 0.0
  %173 = vmatpush.msra.mxu0 0.0
  %174 = vmatpush.msra.mxu0 0.0
  %175 = vmatpush.msra.mxu0 0.0
  %176 = vmatpush.msra.mxu0 0.0
  %177 = vmatpush.msra.mxu0 %v66
  %178 = vmatmul.f32.gmra.mxu0 %v52
  %v179 = vpop.f32.mrf.mxu0
  %v180 = vadd.f32 0.0, %v179
  %181 = vmatmul.f32.gmra.mxu0 %v55
  %v182 = vpop.f32.mrf.mxu0
  %v183 = vadd.f32 0.0, %v182
  %184 = vdwg.mxu0
  %185 = vmatpush.msra.mxu0 0.0
  %186 = vmatpush.msra.mxu0 0.0
  %187 = vmatpush.msra.mxu0 0.0
  %188 = vmatpush.msra.mxu0 0.0
  %189 = vmatpush.msra.mxu0 0.0
  %190 = vmatpush.msra.mxu0 0.0
  %191 = vmatpush.msra.mxu0 0.0
  %192 = vmatpush.msra.mxu0 0.0
  %193 = vmatpush.msra.mxu0 0.0
  %194 = vmatpush.msra.mxu0 0.0
  %195 = vmatpush.msra.mxu0 0.0
  %196 = vmatpush.msra.mxu0 0.0
  %197 = vmatpush.msra.mxu0 0.0
  %198 = vmatpush.msra.mxu0 0.0
  %199 = vmatpush.msra.mxu0 0.0
  %200 = vmatpush.msra.mxu0 %v68
  %201 = vmatmul.f32.gmra.mxu0 %v52
  %v202 = vpop.f32.mrf.mxu0
  %v203 = vadd.f32 0.0, %v202
  %204 = vmatmul.f32.gmra.mxu0 %v55
  %v205 = vpop.f32.mrf.mxu0
  %v206 = vadd.f32 0.0, %v205
  %207 = vdwg.mxu0
  %v208 = vadd.f32 %v24, %v88
  %v209 = vadd.f32 %v24, %v111
  %v210 = vadd.f32 %v24, %v134
  %v211 = vadd.f32 %v24, %v157
  %v212 = vadd.f32 %v24, %v180
  %v213 = vadd.f32 %v24, %v203
  %v214 = vadd.f32 %v29, %v91
  %v215 = vadd.f32 %v29, %v114
  %v216 = vadd.f32 %v29, %v137
  %v217 = vadd.f32 %v29, %v160
  %v218 = vadd.f32 %v29, %v183
  %v219 = vadd.f32 %v29, %v206
  %v220 = vld [vmem:[%s0] sm:$0xff]
  %v221 = vld [vmem:[%s0 + $0x8] sm:$0xff]
  %v222 = vld [vmem:[%s0 + $0x10] sm:$0xff]
  %v223 = vld [vmem:[%s0 + $0x18] sm:$0xf]
  %s224 = scalar_lea.vmem %s1, 16
  %v225 = vld [vmem:[%s224] sm:$0xff]
  %v226 = vld [vmem:[%s224 + $0x8] sm:$0xff]
  %231 = vst [vmem:[#allocation1] ss:$2 sm:$0xff] %v220
  %s232 = scalar_lea.vmem [#allocation1], 16
  %233 = vst [vmem:[%s232] ss:$2 sm:$0xff] %v221
  %s234 = scalar_lea.vmem [#allocation1], 32
  %235 = vst [vmem:[%s234] ss:$2 sm:$0xff] %v222
  %s236 = scalar_lea.vmem [#allocation1], 48
  %237 = vst [vmem:[%s236] ss:$2 sm:$0xff] %v223
  %v238 = vld.sshfl [vmem:[#allocation1] sm:$0xff pattern:$0x75316420]
  %v239 = vld.sshfl [vmem:[#allocation1 + $0x8] sm:$0xff pattern:$0x75316420]
  %v240 = vld.sshfl [vmem:[#allocation1 + $0x10] sm:$0xff pattern:$0x75316420]
  %v241 = vld.sshfl [vmem:[#allocation1 + $0x18] sm:$0xff pattern:$0x75316420]
  %v242 = vld.sshfl [vmem:[#allocation1 + $0x20] sm:$0xff pattern:$0x75316420]
  %v243 = vld.sshfl [vmem:[#allocation1 + $0x28] sm:$0xff pattern:$0x75316420]
  %v244 = vld.sshfl [vmem:[#allocation1 + $0x30] sm:$0xff pattern:$0x75316420]
  %245 = vrot.lane.b32.xlu0 %v238, 127
  %v246 = vpop.permute.xlu0 %245
  %247 = vrot.lane.b32.xlu0 %v239, 127
  %v248 = vpop.permute.xlu0 %247
  %249 = vrot.lane.b32.xlu0 %v240, 127
  %v250 = vpop.permute.xlu0 %249
  %251 = vrot.lane.b32.xlu0 %v241, 127
  %v252 = vpop.permute.xlu0 %251
  %253 = vrot.lane.b32.xlu0 %v242, 127
  %v254 = vpop.permute.xlu0 %253
  %255 = vrot.lane.b32.xlu0 %v243, 127
  %v256 = vpop.permute.xlu0 %255
  %257 = vrot.lane.b32.xlu0 %v244, 127
  %v258 = vpop.permute.xlu0 %257
  %vm259 = vcmask 1039360
  %v260 = vsel %vm259, %v246, %v248
  %v261 = vsel %vm259, %v248, %v250
  %v262 = vsel %vm259, %v250, %v252
  %v263 = vsel %vm259, %v252, %v254
  %v264 = vsel %vm259, %v254, %v256
  %v265 = vsel %vm259, %v256, %v258
  %v267 = vsel %vm50, %v225, 0
  %v270 = vsel %vm50, %v226, 0
  %v272 = vsel %vm57, %v260, 0
  %v274 = vsel %vm57, %v261, 0
  %v276 = vsel %vm57, %v262, 0
  %v278 = vsel %vm57, %v263, 0
  %v280 = vsel %vm57, %v264, 0
  %v282 = vsel %vm57, %v265, 0
  %284 = vmatpush.msra.mxu0 0.0
  %285 = vmatpush.msra.mxu0 0.0
  %286 = vmatpush.msra.mxu0 0.0
  %287 = vmatpush.msra.mxu0 0.0
  %288 = vmatpush.msra.mxu0 0.0
  %289 = vmatpush.msra.mxu0 0.0
  %290 = vmatpush.msra.mxu0 0.0
  %291 = vmatpush.msra.mxu0 0.0
  %292 = vmatpush.msra.mxu0 0.0
  %293 = vmatpush.msra.mxu0 0.0
  %294 = vmatpush.msra.mxu0 0.0
  %295 = vmatpush.msra.mxu0 0.0
  %296 = vmatpush.msra.mxu0 0.0
  %297 = vmatpush.msra.mxu0 0.0
  %298 = vmatpush.msra.mxu0 0.0
  %299 = vmatpush.msra.mxu0 %v272
  %300 = vmatmul.f32.gmra.mxu0 %v267
  %v301 = vpop.f32.mrf.mxu0
  %v302 = vadd.f32 0.0, %v301
  %303 = vmatmul.f32.gmra.mxu0 %v270
  %v304 = vpop.f32.mrf.mxu0
  %v305 = vadd.f32 0.0, %v304
  %306 = vdwg.mxu0
  %307 = vmatpush.msra.mxu0 0.0
  %308 = vmatpush.msra.mxu0 0.0
  %309 = vmatpush.msra.mxu0 0.0
  %310 = vmatpush.msra.mxu0 0.0
  %311 = vmatpush.msra.mxu0 0.0
  %312 = vmatpush.msra.mxu0 0.0
  %313 = vmatpush.msra.mxu0 0.0
  %314 = vmatpush.msra.mxu0 0.0
  %315 = vmatpush.msra.mxu0 0.0
  %316 = vmatpush.msra.mxu0 0.0
  %317 = vmatpush.msra.mxu0 0.0
  %318 = vmatpush.msra.mxu0 0.0
  %319 = vmatpush.msra.mxu0 0.0
  %320 = vmatpush.msra.mxu0 0.0
  %321 = vmatpush.msra.mxu0 0.0
  %322 = vmatpush.msra.mxu0 %v274
  %323 = vmatmul.f32.gmra.mxu0 %v267
  %v324 = vpop.f32.mrf.mxu0
  %v325 = vadd.f32 0.0, %v324
  %326 = vmatmul.f32.gmra.mxu0 %v270
  %v327 = vpop.f32.mrf.mxu0
  %v328 = vadd.f32 0.0, %v327
  %329 = vdwg.mxu0
  %330 = vmatpush.msra.mxu0 0.0
  %331 = vmatpush.msra.mxu0 0.0
  %332 = vmatpush.msra.mxu0 0.0
  %333 = vmatpush.msra.mxu0 0.0
  %334 = vmatpush.msra.mxu0 0.0
  %335 = vmatpush.msra.mxu0 0.0
  %336 = vmatpush.msra.mxu0 0.0
  %337 = vmatpush.msra.mxu0 0.0
  %338 = vmatpush.msra.mxu0 0.0
  %339 = vmatpush.msra.mxu0 0.0
  %340 = vmatpush.msra.mxu0 0.0
  %341 = vmatpush.msra.mxu0 0.0
  %342 = vmatpush.msra.mxu0 0.0
  %343 = vmatpush.msra.mxu0 0.0
  %344 = vmatpush.msra.mxu0 0.0
  %345 = vmatpush.msra.mxu0 %v276
  %346 = vmatmul.f32.gmra.mxu0 %v267
  %v347 = vpop.f32.mrf.mxu0
  %v348 = vadd.f32 0.0, %v347
  %349 = vmatmul.f32.gmra.mxu0 %v270
  %v350 = vpop.f32.mrf.mxu0
  %v351 = vadd.f32 0.0, %v350
  %352 = vdwg.mxu0
  %353 = vmatpush.msra.mxu0 0.0
  %354 = vmatpush.msra.mxu0 0.0
  %355 = vmatpush.msra.mxu0 0.0
  %356 = vmatpush.msra.mxu0 0.0
  %357 = vmatpush.msra.mxu0 0.0
  %358 = vmatpush.msra.mxu0 0.0
  %359 = vmatpush.msra.mxu0 0.0
  %360 = vmatpush.msra.mxu0 0.0
  %361 = vmatpush.msra.mxu0 0.0
  %362 = vmatpush.msra.mxu0 0.0
  %363 = vmatpush.msra.mxu0 0.0
  %364 = vmatpush.msra.mxu0 0.0
  %365 = vmatpush.msra.mxu0 0.0
  %366 = vmatpush.msra.mxu0 0.0
  %367 = vmatpush.msra.mxu0 0.0
  %368 = vmatpush.msra.mxu0 %v278
  %369 = vmatmul.f32.gmra.mxu0 %v267
  %v370 = vpop.f32.mrf.mxu0
  %v371 = vadd.f32 0.0, %v370
  %372 = vmatmul.f32.gmra.mxu0 %v270
  %v373 = vpop.f32.mrf.mxu0
  %v374 = vadd.f32 0.0, %v373
  %375 = vdwg.mxu0
  %376 = vmatpush.msra.mxu0 0.0
  %377 = vmatpush.msra.mxu0 0.0
  %378 = vmatpush.msra.mxu0 0.0
  %379 = vmatpush.msra.mxu0 0.0
  %380 = vmatpush.msra.mxu0 0.0
  %381 = vmatpush.msra.mxu0 0.0
  %382 = vmatpush.msra.mxu0 0.0
  %383 = vmatpush.msra.mxu0 0.0
  %384 = vmatpush.msra.mxu0 0.0
  %385 = vmatpush.msra.mxu0 0.0
  %386 = vmatpush.msra.mxu0 0.0
  %387 = vmatpush.msra.mxu0 0.0
  %388 = vmatpush.msra.mxu0 0.0
  %389 = vmatpush.msra.mxu0 0.0
  %390 = vmatpush.msra.mxu0 0.0
  %391 = vmatpush.msra.mxu0 %v280
  %392 = vmatmul.f32.gmra.mxu0 %v267
  %v393 = vpop.f32.mrf.mxu0
  %v394 = vadd.f32 0.0, %v393
  %395 = vmatmul.f32.gmra.mxu0 %v270
  %v396 = vpop.f32.mrf.mxu0
  %v397 = vadd.f32 0.0, %v396
  %398 = vdwg.mxu0
  %399 = vmatpush.msra.mxu0 0.0
  %400 = vmatpush.msra.mxu0 0.0
  %401 = vmatpush.msra.mxu0 0.0
  %402 = vmatpush.msra.mxu0 0.0
  %403 = vmatpush.msra.mxu0 0.0
  %404 = vmatpush.msra.mxu0 0.0
  %405 = vmatpush.msra.mxu0 0.0
  %406 = vmatpush.msra.mxu0 0.0
  %407 = vmatpush.msra.mxu0 0.0
  %408 = vmatpush.msra.mxu0 0.0
  %409 = vmatpush.msra.mxu0 0.0
  %410 = vmatpush.msra.mxu0 0.0
  %411 = vmatpush.msra.mxu0 0.0
  %412 = vmatpush.msra.mxu0 0.0
  %413 = vmatpush.msra.mxu0 0.0
  %414 = vmatpush.msra.mxu0 %v282
  %415 = vmatmul.f32.gmra.mxu0 %v267
  %v416 = vpop.f32.mrf.mxu0
  %v417 = vadd.f32 0.0, %v416
  %418 = vmatmul.f32.gmra.mxu0 %v270
  %v419 = vpop.f32.mrf.mxu0
  %v420 = vadd.f32 0.0, %v419
  %421 = vdwg.mxu0
  %v422 = vadd.f32 %v208, %v302
  %v423 = vadd.f32 %v209, %v325
  %v424 = vadd.f32 %v210, %v348
  %v425 = vadd.f32 %v211, %v371
  %v426 = vadd.f32 %v212, %v394
  %v427 = vadd.f32 %v213, %v417
  %v428 = vadd.f32 %v214, %v305
  %v429 = vadd.f32 %v215, %v328
  %v430 = vadd.f32 %v216, %v351
  %v431 = vadd.f32 %v217, %v374
  %v432 = vadd.f32 %v218, %v397
  %v433 = vadd.f32 %v219, %v420
  %v434 = vld [vmem:[%s0] sm:$0xff]
  %v435 = vld [vmem:[%s0 + $0x8] sm:$0xff]
  %v436 = vld [vmem:[%s0 + $0x10] sm:$0xff]
  %v437 = vld [vmem:[%s0 + $0x18] sm:$0xf]
  %s438 = scalar_lea.vmem %s1, 32
  %v439 = vld [vmem:[%s438] sm:$0xff]
  %v440 = vld [vmem:[%s438 + $0x8] sm:$0xff]
  %445 = vst [vmem:[#allocation1] ss:$2 sm:$0xff] %v434
  %s446 = scalar_lea.vmem [#allocation1], 16
  %447 = vst [vmem:[%s446] ss:$2 sm:$0xff] %v435
  %s448 = scalar_lea.vmem [#allocation1], 32
  %449 = vst [vmem:[%s448] ss:$2 sm:$0xff] %v436
  %s450 = scalar_lea.vmem [#allocation1], 48
  %451 = vst [vmem:[%s450] ss:$2 sm:$0xff] %v437
  %v452 = vld.sshfl [vmem:[#allocation1] sm:$0xff pattern:$0x75316420]
  %v453 = vld.sshfl [vmem:[#allocation1 + $0x8] sm:$0xff pattern:$0x75316420]
  %v454 = vld.sshfl [vmem:[#allocation1 + $0x10] sm:$0xff pattern:$0x75316420]
  %v455 = vld.sshfl [vmem:[#allocation1 + $0x18] sm:$0xff pattern:$0x75316420]
  %v456 = vld.sshfl [vmem:[#allocation1 + $0x20] sm:$0xff pattern:$0x75316420]
  %v457 = vld.sshfl [vmem:[#allocation1 + $0x28] sm:$0xff pattern:$0x75316420]
  %v458 = vld.sshfl [vmem:[#allocation1 + $0x30] sm:$0xff pattern:$0x75316420]
  %459 = vrot.lane.b32.xlu0 %v452, 126
  %v460 = vpop.permute.xlu0 %459
  %461 = vrot.lane.b32.xlu0 %v453, 126
  %v462 = vpop.permute.xlu0 %461
  %463 = vrot.lane.b32.xlu0 %v454, 126
  %v464 = vpop.permute.xlu0 %463
  %465 = vrot.lane.b32.xlu0 %v455, 126
  %v466 = vpop.permute.xlu0 %465
  %467 = vrot.lane.b32.xlu0 %v456, 126
  %v468 = vpop.permute.xlu0 %467
  %469 = vrot.lane.b32.xlu0 %v457, 126
  %v470 = vpop.permute.xlu0 %469
  %471 = vrot.lane.b32.xlu0 %v458, 126
  %v472 = vpop.permute.xlu0 %471
  %vm473 = vcmask 1031168
  %v474 = vsel %vm473, %v460, %v462
  %v475 = vsel %vm473, %v462, %v464
  %v476 = vsel %vm473, %v464, %v466
  %v477 = vsel %vm473, %v466, %v468
  %v478 = vsel %vm473, %v468, %v470
  %v479 = vsel %vm473, %v470, %v472
  %v481 = vsel %vm50, %v439, 0
  %v484 = vsel %vm50, %v440, 0
  %v486 = vsel %vm57, %v474, 0
  %v488 = vsel %vm57, %v475, 0
  %v490 = vsel %vm57, %v476, 0
  %v492 = vsel %vm57, %v477, 0
  %v494 = vsel %vm57, %v478, 0
  %v496 = vsel %vm57, %v479, 0
  %498 = vmatpush.msra.mxu0 0.0
  %499 = vmatpush.msra.mxu0 0.0
  %500 = vmatpush.msra.mxu0 0.0
  %501 = vmatpush.msra.mxu0 0.0
  %502 = vmatpush.msra.mxu0 0.0
  %503 = vmatpush.msra.mxu0 0.0
  %504 = vmatpush.msra.mxu0 0.0
  %505 = vmatpush.msra.mxu0 0.0
  %506 = vmatpush.msra.mxu0 0.0
  %507 = vmatpush.msra.mxu0 0.0
  %508 = vmatpush.msra.mxu0 0.0
  %509 = vmatpush.msra.mxu0 0.0
  %510 = vmatpush.msra.mxu0 0.0
  %511 = vmatpush.msra.mxu0 0.0
  %512 = vmatpush.msra.mxu0 0.0
  %513 = vmatpush.msra.mxu0 %v486
  %514 = vmatmul.f32.gmra.mxu0 %v481
  %v515 = vpop.f32.mrf.mxu0
  %v516 = vadd.f32 0.0, %v515
  %517 = vmatmul.f32.gmra.mxu0 %v484
  %v518 = vpop.f32.mrf.mxu0
  %v519 = vadd.f32 0.0, %v518
  %520 = vdwg.mxu0
  %521 = vmatpush.msra.mxu0 0.0
  %522 = vmatpush.msra.mxu0 0.0
  %523 = vmatpush.msra.mxu0 0.0
  %524 = vmatpush.msra.mxu0 0.0
  %525 = vmatpush.msra.mxu0 0.0
  %526 = vmatpush.msra.mxu0 0.0
  %527 = vmatpush.msra.mxu0 0.0
  %528 = vmatpush.msra.mxu0 0.0
  %529 = vmatpush.msra.mxu0 0.0
  %530 = vmatpush.msra.mxu0 0.0
  %531 = vmatpush.msra.mxu0 0.0
  %532 = vmatpush.msra.mxu0 0.0
  %533 = vmatpush.msra.mxu0 0.0
  %534 = vmatpush.msra.mxu0 0.0
  %535 = vmatpush.msra.mxu0 0.0
  %536 = vmatpush.msra.mxu0 %v488
  %537 = vmatmul.f32.gmra.mxu0 %v481
  %v538 = vpop.f32.mrf.mxu0
  %v539 = vadd.f32 0.0, %v538
  %540 = vmatmul.f32.gmra.mxu0 %v484
  %v541 = vpop.f32.mrf.mxu0
  %v542 = vadd.f32 0.0, %v541
  %543 = vdwg.mxu0
  %544 = vmatpush.msra.mxu0 0.0
  %545 = vmatpush.msra.mxu0 0.0
  %546 = vmatpush.msra.mxu0 0.0
  %547 = vmatpush.msra.mxu0 0.0
  %548 = vmatpush.msra.mxu0 0.0
  %549 = vmatpush.msra.mxu0 0.0
  %550 = vmatpush.msra.mxu0 0.0
  %551 = vmatpush.msra.mxu0 0.0
  %552 = vmatpush.msra.mxu0 0.0
  %553 = vmatpush.msra.mxu0 0.0
  %554 = vmatpush.msra.mxu0 0.0
  %555 = vmatpush.msra.mxu0 0.0
  %556 = vmatpush.msra.mxu0 0.0
  %557 = vmatpush.msra.mxu0 0.0
  %558 = vmatpush.msra.mxu0 0.0
  %559 = vmatpush.msra.mxu0 %v490
  %560 = vmatmul.f32.gmra.mxu0 %v481
  %v561 = vpop.f32.mrf.mxu0
  %v562 = vadd.f32 0.0, %v561
  %563 = vmatmul.f32.gmra.mxu0 %v484
  %v564 = vpop.f32.mrf.mxu0
  %v565 = vadd.f32 0.0, %v564
  %566 = vdwg.mxu0
  %567 = vmatpush.msra.mxu0 0.0
  %568 = vmatpush.msra.mxu0 0.0
  %569 = vmatpush.msra.mxu0 0.0
  %570 = vmatpush.msra.mxu0 0.0
  %571 = vmatpush.msra.mxu0 0.0
  %572 = vmatpush.msra.mxu0 0.0
  %573 = vmatpush.msra.mxu0 0.0
  %574 = vmatpush.msra.mxu0 0.0
  %575 = vmatpush.msra.mxu0 0.0
  %576 = vmatpush.msra.mxu0 0.0
  %577 = vmatpush.msra.mxu0 0.0
  %578 = vmatpush.msra.mxu0 0.0
  %579 = vmatpush.msra.mxu0 0.0
  %580 = vmatpush.msra.mxu0 0.0
  %581 = vmatpush.msra.mxu0 0.0
  %582 = vmatpush.msra.mxu0 %v492
  %583 = vmatmul.f32.gmra.mxu0 %v481
  %v584 = vpop.f32.mrf.mxu0
  %v585 = vadd.f32 0.0, %v584
  %586 = vmatmul.f32.gmra.mxu0 %v484
  %v587 = vpop.f32.mrf.mxu0
  %v588 = vadd.f32 0.0, %v587
  %589 = vdwg.mxu0
  %590 = vmatpush.msra.mxu0 0.0
  %591 = vmatpush.msra.mxu0 0.0
  %592 = vmatpush.msra.mxu0 0.0
  %593 = vmatpush.msra.mxu0 0.0
  %594 = vmatpush.msra.mxu0 0.0
  %595 = vmatpush.msra.mxu0 0.0
  %596 = vmatpush.msra.mxu0 0.0
  %597 = vmatpush.msra.mxu0 0.0
  %598 = vmatpush.msra.mxu0 0.0
  %599 = vmatpush.msra.mxu0 0.0
  %600 = vmatpush.msra.mxu0 0.0
  %601 = vmatpush.msra.mxu0 0.0
  %602 = vmatpush.msra.mxu0 0.0
  %603 = vmatpush.msra.mxu0 0.0
  %604 = vmatpush.msra.mxu0 0.0
  %605 = vmatpush.msra.mxu0 %v494
  %606 = vmatmul.f32.gmra.mxu0 %v481
  %v607 = vpop.f32.mrf.mxu0
  %v608 = vadd.f32 0.0, %v607
  %609 = vmatmul.f32.gmra.mxu0 %v484
  %v610 = vpop.f32.mrf.mxu0
  %v611 = vadd.f32 0.0, %v610
  %612 = vdwg.mxu0
  %613 = vmatpush.msra.mxu0 0.0
  %614 = vmatpush.msra.mxu0 0.0
  %615 = vmatpush.msra.mxu0 0.0
  %616 = vmatpush.msra.mxu0 0.0
  %617 = vmatpush.msra.mxu0 0.0
  %618 = vmatpush.msra.mxu0 0.0
  %619 = vmatpush.msra.mxu0 0.0
  %620 = vmatpush.msra.mxu0 0.0
  %621 = vmatpush.msra.mxu0 0.0
  %622 = vmatpush.msra.mxu0 0.0
  %623 = vmatpush.msra.mxu0 0.0
  %624 = vmatpush.msra.mxu0 0.0
  %625 = vmatpush.msra.mxu0 0.0
  %626 = vmatpush.msra.mxu0 0.0
  %627 = vmatpush.msra.mxu0 0.0
  %628 = vmatpush.msra.mxu0 %v496
  %629 = vmatmul.f32.gmra.mxu0 %v481
  %v630 = vpop.f32.mrf.mxu0
  %v631 = vadd.f32 0.0, %v630
  %632 = vmatmul.f32.gmra.mxu0 %v484
  %v633 = vpop.f32.mrf.mxu0
  %v634 = vadd.f32 0.0, %v633
  %635 = vdwg.mxu0
  %v636 = vadd.f32 %v422, %v516
  %v637 = vadd.f32 %v423, %v539
  %v638 = vadd.f32 %v424, %v562
  %v639 = vadd.f32 %v425, %v585
  %v640 = vadd.f32 %v426, %v608
  %v641 = vadd.f32 %v427, %v631
  %v642 = vadd.f32 %v428, %v519
  %v643 = vadd.f32 %v429, %v542
  %v644 = vadd.f32 %v430, %v565
  %v645 = vadd.f32 %v431, %v588
  %v646 = vadd.f32 %v432, %v611
  %v647 = vadd.f32 %v433, %v634
  %v648 = vld [vmem:[%s0] sm:$0xff]
  %v649 = vld [vmem:[%s0 + $0x8] sm:$0xff]
  %v650 = vld [vmem:[%s0 + $0x10] sm:$0xff]
  %v651 = vld [vmem:[%s0 + $0x18] sm:$0xf]
  %s652 = scalar_lea.vmem %s1, 48
  %v653 = vld [vmem:[%s652] sm:$0xff]
  %v654 = vld [vmem:[%s652 + $0x8] sm:$0xff]
  %659 = vst [vmem:[#allocation1] ss:$2 sm:$0xff] %v648
  %s660 = scalar_lea.vmem [#allocation1], 16
  %661 = vst [vmem:[%s660] ss:$2 sm:$0xff] %v649
  %s662 = scalar_lea.vmem [#allocation1], 32
  %663 = vst [vmem:[%s662] ss:$2 sm:$0xff] %v650
  %s664 = scalar_lea.vmem [#allocation1], 48
  %665 = vst [vmem:[%s664] ss:$2 sm:$0xff] %v651
  %v666 = vld.sshfl [vmem:[#allocation1] sm:$0xff pattern:$0x75316420]
  %v667 = vld.sshfl [vmem:[#allocation1 + $0x8] sm:$0xff pattern:$0x75316420]
  %v668 = vld.sshfl [vmem:[#allocation1 + $0x10] sm:$0xff pattern:$0x75316420]
  %v669 = vld.sshfl [vmem:[#allocation1 + $0x18] sm:$0xff pattern:$0x75316420]
  %v670 = vld.sshfl [vmem:[#allocation1 + $0x20] sm:$0xff pattern:$0x75316420]
  %v671 = vld.sshfl [vmem:[#allocation1 + $0x28] sm:$0xff pattern:$0x75316420]
  %v672 = vld.sshfl [vmem:[#allocation1 + $0x30] sm:$0xff pattern:$0x75316420]
  %673 = vrot.lane.b32.xlu0 %v666, 110
  %v674 = vpop.permute.xlu0 %673
  %675 = vrot.lane.b32.xlu0 %v667, 110
  %v676 = vpop.permute.xlu0 %675
  %677 = vrot.lane.b32.xlu0 %v668, 110
  %v678 = vpop.permute.xlu0 %677
  %679 = vrot.lane.b32.xlu0 %v669, 110
  %v680 = vpop.permute.xlu0 %679
  %681 = vrot.lane.b32.xlu0 %v670, 110
  %v682 = vpop.permute.xlu0 %681
  %683 = vrot.lane.b32.xlu0 %v671, 110
  %v684 = vpop.permute.xlu0 %683
  %685 = vrot.lane.b32.xlu0 %v672, 110
  %v686 = vpop.permute.xlu0 %685
  %vm687 = vcmask 900096
  %v688 = vsel %vm687, %v674, %v676
  %v689 = vsel %vm687, %v676, %v678
  %v690 = vsel %vm687, %v678, %v680
  %v691 = vsel %vm687, %v680, %v682
  %v692 = vsel %vm687, %v682, %v684
  %v693 = vsel %vm687, %v684, %v686
  %v695 = vsel %vm50, %v653, 0
  %v698 = vsel %vm50, %v654, 0
  %v700 = vsel %vm57, %v688, 0
  %v702 = vsel %vm57, %v689, 0
  %v704 = vsel %vm57, %v690, 0
  %v706 = vsel %vm57, %v691, 0
  %v708 = vsel %vm57, %v692, 0
  %v710 = vsel %vm57, %v693, 0
  %712 = vmatpush.msra.mxu0 0.0
  %713 = vmatpush.msra.mxu0 0.0
  %714 = vmatpush.msra.mxu0 0.0
  %715 = vmatpush.msra.mxu0 0.0
  %716 = vmatpush.msra.mxu0 0.0
  %717 = vmatpush.msra.mxu0 0.0
  %718 = vmatpush.msra.mxu0 0.0
  %719 = vmatpush.msra.mxu0 0.0
  %720 = vmatpush.msra.mxu0 0.0
  %721 = vmatpush.msra.mxu0 0.0
  %722 = vmatpush.msra.mxu0 0.0
  %723 = vmatpush.msra.mxu0 0.0
  %724 = vmatpush.msra.mxu0 0.0
  %725 = vmatpush.msra.mxu0 0.0
  %726 = vmatpush.msra.mxu0 0.0
  %727 = vmatpush.msra.mxu0 %v700
  %728 = vmatmul.f32.gmra.mxu0 %v695
  %v729 = vpop.f32.mrf.mxu0
  %v730 = vadd.f32 0.0, %v729
  %731 = vmatmul.f32.gmra.mxu0 %v698
  %v732 = vpop.f32.mrf.mxu0
  %v733 = vadd.f32 0.0, %v732
  %734 = vdwg.mxu0
  %735 = vmatpush.msra.mxu0 0.0
  %736 = vmatpush.msra.mxu0 0.0
  %737 = vmatpush.msra.mxu0 0.0
  %738 = vmatpush.msra.mxu0 0.0
  %739 = vmatpush.msra.mxu0 0.0
  %740 = vmatpush.msra.mxu0 0.0
  %741 = vmatpush.msra.mxu0 0.0
  %742 = vmatpush.msra.mxu0 0.0
  %743 = vmatpush.msra.mxu0 0.0
  %744 = vmatpush.msra.mxu0 0.0
  %745 = vmatpush.msra.mxu0 0.0
  %746 = vmatpush.msra.mxu0 0.0
  %747 = vmatpush.msra.mxu0 0.0
  %748 = vmatpush.msra.mxu0 0.0
  %749 = vmatpush.msra.mxu0 0.0
  %750 = vmatpush.msra.mxu0 %v702
  %751 = vmatmul.f32.gmra.mxu0 %v695
  %v752 = vpop.f32.mrf.mxu0
  %v753 = vadd.f32 0.0, %v752
  %754 = vmatmul.f32.gmra.mxu0 %v698
  %v755 = vpop.f32.mrf.mxu0
  %v756 = vadd.f32 0.0, %v755
  %757 = vdwg.mxu0
  %758 = vmatpush.msra.mxu0 0.0
  %759 = vmatpush.msra.mxu0 0.0
  %760 = vmatpush.msra.mxu0 0.0
  %761 = vmatpush.msra.mxu0 0.0
  %762 = vmatpush.msra.mxu0 0.0
  %763 = vmatpush.msra.mxu0 0.0
  %764 = vmatpush.msra.mxu0 0.0
  %765 = vmatpush.msra.mxu0 0.0
  %766 = vmatpush.msra.mxu0 0.0
  %767 = vmatpush.msra.mxu0 0.0
  %768 = vmatpush.msra.mxu0 0.0
  %769 = vmatpush.msra.mxu0 0.0
  %770 = vmatpush.msra.mxu0 0.0
  %771 = vmatpush.msra.mxu0 0.0
  %772 = vmatpush.msra.mxu0 0.0
  %773 = vmatpush.msra.mxu0 %v704
  %774 = vmatmul.f32.gmra.mxu0 %v695
  %v775 = vpop.f32.mrf.mxu0
  %v776 = vadd.f32 0.0, %v775
  %777 = vmatmul.f32.gmra.mxu0 %v698
  %v778 = vpop.f32.mrf.mxu0
  %v779 = vadd.f32 0.0, %v778
  %780 = vdwg.mxu0
  %781 = vmatpush.msra.mxu0 0.0
  %782 = vmatpush.msra.mxu0 0.0
  %783 = vmatpush.msra.mxu0 0.0
  %784 = vmatpush.msra.mxu0 0.0
  %785 = vmatpush.msra.mxu0 0.0
  %786 = vmatpush.msra.mxu0 0.0
  %787 = vmatpush.msra.mxu0 0.0
  %788 = vmatpush.msra.mxu0 0.0
  %789 = vmatpush.msra.mxu0 0.0
  %790 = vmatpush.msra.mxu0 0.0
  %791 = vmatpush.msra.mxu0 0.0
  %792 = vmatpush.msra.mxu0 0.0
  %793 = vmatpush.msra.mxu0 0.0
  %794 = vmatpush.msra.mxu0 0.0
  %795 = vmatpush.msra.mxu0 0.0
  %796 = vmatpush.msra.mxu0 %v706
  %797 = vmatmul.f32.gmra.mxu0 %v695
  %v798 = vpop.f32.mrf.mxu0
  %v799 = vadd.f32 0.0, %v798
  %800 = vmatmul.f32.gmra.mxu0 %v698
  %v801 = vpop.f32.mrf.mxu0
  %v802 = vadd.f32 0.0, %v801
  %803 = vdwg.mxu0
  %804 = vmatpush.msra.mxu0 0.0
  %805 = vmatpush.msra.mxu0 0.0
  %806 = vmatpush.msra.mxu0 0.0
  %807 = vmatpush.msra.mxu0 0.0
  %808 = vmatpush.msra.mxu0 0.0
  %809 = vmatpush.msra.mxu0 0.0
  %810 = vmatpush.msra.mxu0 0.0
  %811 = vmatpush.msra.mxu0 0.0
  %812 = vmatpush.msra.mxu0 0.0
  %813 = vmatpush.msra.mxu0 0.0
  %814 = vmatpush.msra.mxu0 0.0
  %815 = vmatpush.msra.mxu0 0.0
  %816 = vmatpush.msra.mxu0 0.0
  %817 = vmatpush.msra.mxu0 0.0
  %818 = vmatpush.msra.mxu0 0.0
  %819 = vmatpush.msra.mxu0 %v708
  %820 = vmatmul.f32.gmra.mxu0 %v695
  %v821 = vpop.f32.mrf.mxu0
  %v822 = vadd.f32 0.0, %v821
  %823 = vmatmul.f32.gmra.mxu0 %v698
  %v824 = vpop.f32.mrf.mxu0
  %v825 = vadd.f32 0.0, %v824
  %826 = vdwg.mxu0
  %827 = vmatpush.msra.mxu0 0.0
  %828 = vmatpush.msra.mxu0 0.0
  %829 = vmatpush.msra.mxu0 0.0
  %830 = vmatpush.msra.mxu0 0.0
  %831 = vmatpush.msra.mxu0 0.0
  %832 = vmatpush.msra.mxu0 0.0
  %833 = vmatpush.msra.mxu0 0.0
  %834 = vmatpush.msra.mxu0 0.0
  %835 = vmatpush.msra.mxu0 0.0
  %836 = vmatpush.msra.mxu0 0.0
  %837 = vmatpush.msra.mxu0 0.0
  %838 = vmatpush.msra.mxu0 0.0
  %839 = vmatpush.msra.mxu0 0.0
  %840 = vmatpush.msra.mxu0 0.0
  %841 = vmatpush.msra.mxu0 0.0
  %842 = vmatpush.msra.mxu0 %v710
  %843 = vmatmul.f32.gmra.mxu0 %v695
  %v844 = vpop.f32.mrf.mxu0
  %v845 = vadd.f32 0.0, %v844
  %846 = vmatmul.f32.gmra.mxu0 %v698
  %v847 = vpop.f32.mrf.mxu0
  %v848 = vadd.f32 0.0, %v847
  %849 = vdwg.mxu0
  %v850 = vadd.f32 %v636, %v730
  %v851 = vadd.f32 %v637, %v753
  %v852 = vadd.f32 %v638, %v776
  %v853 = vadd.f32 %v639, %v799
  %v854 = vadd.f32 %v640, %v822
  %v855 = vadd.f32 %v641, %v845
  %v856 = vadd.f32 %v642, %v733
  %v857 = vadd.f32 %v643, %v756
  %v858 = vadd.f32 %v644, %v779
  %v859 = vadd.f32 %v645, %v802
  %v860 = vadd.f32 %v646, %v825
  %v861 = vadd.f32 %v647, %v848
  %v862 = vld [vmem:[%s0] sm:$0xff]
  %v863 = vld [vmem:[%s0 + $0x8] sm:$0xff]
  %v864 = vld [vmem:[%s0 + $0x10] sm:$0xff]
  %v865 = vld [vmem:[%s0 + $0x18] sm:$0xf]
  %s866 = scalar_lea.vmem %s1, 64
  %v867 = vld [vmem:[%s866] sm:$0xff]
  %v868 = vld [vmem:[%s866 + $0x8] sm:$0xff]
  %873 = vst [vmem:[#allocation1] ss:$2 sm:$0xff] %v862
  %s874 = scalar_lea.vmem [#allocation1], 16
  %875 = vst [vmem:[%s874] ss:$2 sm:$0xff] %v863
  %s876 = scalar_lea.vmem [#allocation1], 32
  %877 = vst [vmem:[%s876] ss:$2 sm:$0xff] %v864
  %s878 = scalar_lea.vmem [#allocation1], 48
  %879 = vst [vmem:[%s878] ss:$2 sm:$0xff] %v865
  %v880 = vld.sshfl [vmem:[#allocation1] sm:$0xff pattern:$0x75316420]
  %v881 = vld.sshfl [vmem:[#allocation1 + $0x8] sm:$0xff pattern:$0x75316420]
  %v882 = vld.sshfl [vmem:[#allocation1 + $0x10] sm:$0xff pattern:$0x75316420]
  %v883 = vld.sshfl [vmem:[#allocation1 + $0x18] sm:$0xff pattern:$0x75316420]
  %v884 = vld.sshfl [vmem:[#allocation1 + $0x20] sm:$0xff pattern:$0x75316420]
  %v885 = vld.sshfl [vmem:[#allocation1 + $0x28] sm:$0xff pattern:$0x75316420]
  %v886 = vld.sshfl [vmem:[#allocation1 + $0x30] sm:$0xff pattern:$0x75316420]
  %887 = vrot.lane.b32.xlu0 %v880, 109
  %v888 = vpop.permute.xlu0 %887
  %889 = vrot.lane.b32.xlu0 %v881, 109
  %v890 = vpop.permute.xlu0 %889
  %891 = vrot.lane.b32.xlu0 %v882, 109
  %v892 = vpop.permute.xlu0 %891
  %893 = vrot.lane.b32.xlu0 %v883, 109
  %v894 = vpop.permute.xlu0 %893
  %895 = vrot.lane.b32.xlu0 %v884, 109
  %v896 = vpop.permute.xlu0 %895
  %897 = vrot.lane.b32.xlu0 %v885, 109
  %v898 = vpop.permute.xlu0 %897
  %899 = vrot.lane.b32.xlu0 %v886, 109
  %v900 = vpop.permute.xlu0 %899
  %vm901 = vcmask 891904
  %v902 = vsel %vm901, %v888, %v890
  %v903 = vsel %vm901, %v890, %v892
  %v904 = vsel %vm901, %v892, %v894
  %v905 = vsel %vm901, %v894, %v896
  %v906 = vsel %vm901, %v896, %v898
  %v907 = vsel %vm901, %v898, %v900
  %v909 = vsel %vm50, %v867, 0
  %v912 = vsel %vm50, %v868, 0
  %v914 = vsel %vm57, %v902, 0
  %v916 = vsel %vm57, %v903, 0
  %v918 = vsel %vm57, %v904, 0
  %v920 = vsel %vm57, %v905, 0
  %v922 = vsel %vm57, %v906, 0
  %v924 = vsel %vm57, %v907, 0
  %926 = vmatpush.msra.mxu0 0.0
  %927 = vmatpush.msra.mxu0 0.0
  %928 = vmatpush.msra.mxu0 0.0
  %929 = vmatpush.msra.mxu0 0.0
  %930 = vmatpush.msra.mxu0 0.0
  %931 = vmatpush.msra.mxu0 0.0
  %932 = vmatpush.msra.mxu0 0.0
  %933 = vmatpush.msra.mxu0 0.0
  %934 = vmatpush.msra.mxu0 0.0
  %935 = vmatpush.msra.mxu0 0.0
  %936 = vmatpush.msra.mxu0 0.0
  %937 = vmatpush.msra.mxu0 0.0
  %938 = vmatpush.msra.mxu0 0.0
  %939 = vmatpush.msra.mxu0 0.0
  %940 = vmatpush.msra.mxu0 0.0
  %941 = vmatpush.msra.mxu0 %v914
  %942 = vmatmul.f32.gmra.mxu0 %v909
  %v943 = vpop.f32.mrf.mxu0
  %v944 = vadd.f32 0.0, %v943
  %945 = vmatmul.f32.gmra.mxu0 %v912
  %v946 = vpop.f32.mrf.mxu0
  %v947 = vadd.f32 0.0, %v946
  %948 = vdwg.mxu0
  %949 = vmatpush.msra.mxu0 0.0
  %950 = vmatpush.msra.mxu0 0.0
  %951 = vmatpush.msra.mxu0 0.0
  %952 = vmatpush.msra.mxu0 0.0
  %953 = vmatpush.msra.mxu0 0.0
  %954 = vmatpush.msra.mxu0 0.0
  %955 = vmatpush.msra.mxu0 0.0
  %956 = vmatpush.msra.mxu0 0.0
  %957 = vmatpush.msra.mxu0 0.0
  %958 = vmatpush.msra.mxu0 0.0
  %959 = vmatpush.msra.mxu0 0.0
  %960 = vmatpush.msra.mxu0 0.0
  %961 = vmatpush.msra.mxu0 0.0
  %962 = vmatpush.msra.mxu0 0.0
  %963 = vmatpush.msra.mxu0 0.0
  %964 = vmatpush.msra.mxu0 %v916
  %965 = vmatmul.f32.gmra.mxu0 %v909
  %v966 = vpop.f32.mrf.mxu0
  %v967 = vadd.f32 0.0, %v966
  %968 = vmatmul.f32.gmra.mxu0 %v912
  %v969 = vpop.f32.mrf.mxu0
  %v970 = vadd.f32 0.0, %v969
  %971 = vdwg.mxu0
  %972 = vmatpush.msra.mxu0 0.0
  %973 = vmatpush.msra.mxu0 0.0
  %974 = vmatpush.msra.mxu0 0.0
  %975 = vmatpush.msra.mxu0 0.0
  %976 = vmatpush.msra.mxu0 0.0
  %977 = vmatpush.msra.mxu0 0.0
  %978 = vmatpush.msra.mxu0 0.0
  %979 = vmatpush.msra.mxu0 0.0
  %980 = vmatpush.msra.mxu0 0.0
  %981 = vmatpush.msra.mxu0 0.0
  %982 = vmatpush.msra.mxu0 0.0
  %983 = vmatpush.msra.mxu0 0.0
  %984 = vmatpush.msra.mxu0 0.0
  %985 = vmatpush.msra.mxu0 0.0
  %986 = vmatpush.msra.mxu0 0.0
  %987 = vmatpush.msra.mxu0 %v918
  %988 = vmatmul.f32.gmra.mxu0 %v909
  %v989 = vpop.f32.mrf.mxu0
  %v990 = vadd.f32 0.0, %v989
  %991 = vmatmul.f32.gmra.mxu0 %v912
  %v992 = vpop.f32.mrf.mxu0
  %v993 = vadd.f32 0.0, %v992
  %994 = vdwg.mxu0
  %995 = vmatpush.msra.mxu0 0.0
  %996 = vmatpush.msra.mxu0 0.0
  %997 = vmatpush.msra.mxu0 0.0
  %998 = vmatpush.msra.mxu0 0.0
  %999 = vmatpush.msra.mxu0 0.0
  %1000 = vmatpush.msra.mxu0 0.0
  %1001 = vmatpush.msra.mxu0 0.0
  %1002 = vmatpush.msra.mxu0 0.0
  %1003 = vmatpush.msra.mxu0 0.0
  %1004 = vmatpush.msra.mxu0 0.0
  %1005 = vmatpush.msra.mxu0 0.0
  %1006 = vmatpush.msra.mxu0 0.0
  %1007 = vmatpush.msra.mxu0 0.0
  %1008 = vmatpush.msra.mxu0 0.0
  %1009 = vmatpush.msra.mxu0 0.0
  %1010 = vmatpush.msra.mxu0 %v920
  %1011 = vmatmul.f32.gmra.mxu0 %v909
  %v1012 = vpop.f32.mrf.mxu0
  %v1013 = vadd.f32 0.0, %v1012
  %1014 = vmatmul.f32.gmra.mxu0 %v912
  %v1015 = vpop.f32.mrf.mxu0
  %v1016 = vadd.f32 0.0, %v1015
  %1017 = vdwg.mxu0
  %1018 = vmatpush.msra.mxu0 0.0
  %1019 = vmatpush.msra.mxu0 0.0
  %1020 = vmatpush.msra.mxu0 0.0
  %1021 = vmatpush.msra.mxu0 0.0
  %1022 = vmatpush.msra.mxu0 0.0
  %1023 = vmatpush.msra.mxu0 0.0
  %1024 = vmatpush.msra.mxu0 0.0
  %1025 = vmatpush.msra.mxu0 0.0
  %1026 = vmatpush.msra.mxu0 0.0
  %1027 = vmatpush.msra.mxu0 0.0
  %1028 = vmatpush.msra.mxu0 0.0
  %1029 = vmatpush.msra.mxu0 0.0
  %1030 = vmatpush.msra.mxu0 0.0
  %1031 = vmatpush.msra.mxu0 0.0
  %1032 = vmatpush.msra.mxu0 0.0
  %1033 = vmatpush.msra.mxu0 %v922
  %1034 = vmatmul.f32.gmra.mxu0 %v909
  %v1035 = vpop.f32.mrf.mxu0
  %v1036 = vadd.f32 0.0, %v1035
  %1037 = vmatmul.f32.gmra.mxu0 %v912
  %v1038 = vpop.f32.mrf.mxu0
  %v1039 = vadd.f32 0.0, %v1038
  %1040 = vdwg.mxu0
  %1041 = vmatpush.msra.mxu0 0.0
  %1042 = vmatpush.msra.mxu0 0.0
  %1043 = vmatpush.msra.mxu0 0.0
  %1044 = vmatpush.msra.mxu0 0.0
  %1045 = vmatpush.msra.mxu0 0.0
  %1046 = vmatpush.msra.mxu0 0.0
  %1047 = vmatpush.msra.mxu0 0.0
  %1048 = vmatpush.msra.mxu0 0.0
  %1049 = vmatpush.msra.mxu0 0.0
  %1050 = vmatpush.msra.mxu0 0.0
  %1051 = vmatpush.msra.mxu0 0.0
  %1052 = vmatpush.msra.mxu0 0.0
  %1053 = vmatpush.msra.mxu0 0.0
  %1054 = vmatpush.msra.mxu0 0.0
  %1055 = vmatpush.msra.mxu0 0.0
  %1056 = vmatpush.msra.mxu0 %v924
  %1057 = vmatmul.f32.gmra.mxu0 %v909
  %v1058 = vpop.f32.mrf.mxu0
  %v1059 = vadd.f32 0.0, %v1058
  %1060 = vmatmul.f32.gmra.mxu0 %v912
  %v1061 = vpop.f32.mrf.mxu0
  %v1062 = vadd.f32 0.0, %v1061
  %1063 = vdwg.mxu0
  %v1064 = vadd.f32 %v850, %v944
  %v1065 = vadd.f32 %v851, %v967
  %v1066 = vadd.f32 %v852, %v990
  %v1067 = vadd.f32 %v853, %v1013
  %v1068 = vadd.f32 %v854, %v1036
  %v1069 = vadd.f32 %v855, %v1059
  %v1070 = vadd.f32 %v856, %v947
  %v1071 = vadd.f32 %v857, %v970
  %v1072 = vadd.f32 %v858, %v993
  %v1073 = vadd.f32 %v859, %v1016
  %v1074 = vadd.f32 %v860, %v1039
  %v1075 = vadd.f32 %v861, %v1062
  %v1076 = vld [vmem:[%s0] sm:$0xff]
  %v1077 = vld [vmem:[%s0 + $0x8] sm:$0xff]
  %v1078 = vld [vmem:[%s0 + $0x10] sm:$0xff]
  %v1079 = vld [vmem:[%s0 + $0x18] sm:$0xf]
  %s1080 = scalar_lea.vmem %s1, 80
  %v1081 = vld [vmem:[%s1080] sm:$0xff]
  %v1082 = vld [vmem:[%s1080 + $0x8] sm:$0xff]
  %1087 = vst [vmem:[#allocation1] ss:$2 sm:$0xff] %v1076
  %s1088 = scalar_lea.vmem [#allocation1], 16
  %1089 = vst [vmem:[%s1088] ss:$2 sm:$0xff] %v1077
  %s1090 = scalar_lea.vmem [#allocation1], 32
  %1091 = vst [vmem:[%s1090] ss:$2 sm:$0xff] %v1078
  %s1092 = scalar_lea.vmem [#allocation1], 48
  %1093 = vst [vmem:[%s1092] ss:$2 sm:$0xff] %v1079
  %v1094 = vld.sshfl [vmem:[#allocation1] sm:$0xff pattern:$0x75316420]
  %v1095 = vld.sshfl [vmem:[#allocation1 + $0x8] sm:$0xff pattern:$0x75316420]
  %v1096 = vld.sshfl [vmem:[#allocation1 + $0x10] sm:$0xff pattern:$0x75316420]
  %v1097 = vld.sshfl [vmem:[#allocation1 + $0x18] sm:$0xff pattern:$0x75316420]
  %v1098 = vld.sshfl [vmem:[#allocation1 + $0x20] sm:$0xff pattern:$0x75316420]
  %v1099 = vld.sshfl [vmem:[#allocation1 + $0x28] sm:$0xff pattern:$0x75316420]
  %v1100 = vld.sshfl [vmem:[#allocation1 + $0x30] sm:$0xff pattern:$0x75316420]
  %1101 = vrot.lane.b32.xlu0 %v1094, 108
  %v1102 = vpop.permute.xlu0 %1101
  %1103 = vrot.lane.b32.xlu0 %v1095, 108
  %v1104 = vpop.permute.xlu0 %1103
  %1105 = vrot.lane.b32.xlu0 %v1096, 108
  %v1106 = vpop.permute.xlu0 %1105
  %1107 = vrot.lane.b32.xlu0 %v1097, 108
  %v1108 = vpop.permute.xlu0 %1107
  %1109 = vrot.lane.b32.xlu0 %v1098, 108
  %v1110 = vpop.permute.xlu0 %1109
  %1111 = vrot.lane.b32.xlu0 %v1099, 108
  %v1112 = vpop.permute.xlu0 %1111
  %1113 = vrot.lane.b32.xlu0 %v1100, 108
  %v1114 = vpop.permute.xlu0 %1113
  %vm1115 = vcmask 883712
  %v1116 = vsel %vm1115, %v1102, %v1104
  %v1117 = vsel %vm1115, %v1104, %v1106
  %v1118 = vsel %vm1115, %v1106, %v1108
  %v1119 = vsel %vm1115, %v1108, %v1110
  %v1120 = vsel %vm1115, %v1110, %v1112
  %v1121 = vsel %vm1115, %v1112, %v1114
  %v1123 = vsel %vm50, %v1081, 0
  %v1126 = vsel %vm50, %v1082, 0
  %v1128 = vsel %vm57, %v1116, 0
  %v1130 = vsel %vm57, %v1117, 0
  %v1132 = vsel %vm57, %v1118, 0
  %v1134 = vsel %vm57, %v1119, 0
  %v1136 = vsel %vm57, %v1120, 0
  %v1138 = vsel %vm57, %v1121, 0
  %1140 = vmatpush.msra.mxu0 0.0
  %1141 = vmatpush.msra.mxu0 0.0
  %1142 = vmatpush.msra.mxu0 0.0
  %1143 = vmatpush.msra.mxu0 0.0
  %1144 = vmatpush.msra.mxu0 0.0
  %1145 = vmatpush.msra.mxu0 0.0
  %1146 = vmatpush.msra.mxu0 0.0
  %1147 = vmatpush.msra.mxu0 0.0
  %1148 = vmatpush.msra.mxu0 0.0
  %1149 = vmatpush.msra.mxu0 0.0
  %1150 = vmatpush.msra.mxu0 0.0
  %1151 = vmatpush.msra.mxu0 0.0
  %1152 = vmatpush.msra.mxu0 0.0
  %1153 = vmatpush.msra.mxu0 0.0
  %1154 = vmatpush.msra.mxu0 0.0
  %1155 = vmatpush.msra.mxu0 %v1128
  %1156 = vmatmul.f32.gmra.mxu0 %v1123
  %v1157 = vpop.f32.mrf.mxu0
  %v1158 = vadd.f32 0.0, %v1157
  %1159 = vmatmul.f32.gmra.mxu0 %v1126
  %v1160 = vpop.f32.mrf.mxu0
  %v1161 = vadd.f32 0.0, %v1160
  %1162 = vdwg.mxu0
  %1163 = vmatpush.msra.mxu0 0.0
  %1164 = vmatpush.msra.mxu0 0.0
  %1165 = vmatpush.msra.mxu0 0.0
  %1166 = vmatpush.msra.mxu0 0.0
  %1167 = vmatpush.msra.mxu0 0.0
  %1168 = vmatpush.msra.mxu0 0.0
  %1169 = vmatpush.msra.mxu0 0.0
  %1170 = vmatpush.msra.mxu0 0.0
  %1171 = vmatpush.msra.mxu0 0.0
  %1172 = vmatpush.msra.mxu0 0.0
  %1173 = vmatpush.msra.mxu0 0.0
  %1174 = vmatpush.msra.mxu0 0.0
  %1175 = vmatpush.msra.mxu0 0.0
  %1176 = vmatpush.msra.mxu0 0.0
  %1177 = vmatpush.msra.mxu0 0.0
  %1178 = vmatpush.msra.mxu0 %v1130
  %1179 = vmatmul.f32.gmra.mxu0 %v1123
  %v1180 = vpop.f32.mrf.mxu0
  %v1181 = vadd.f32 0.0, %v1180
  %1182 = vmatmul.f32.gmra.mxu0 %v1126
  %v1183 = vpop.f32.mrf.mxu0
  %v1184 = vadd.f32 0.0, %v1183
  %1185 = vdwg.mxu0
  %1186 = vmatpush.msra.mxu0 0.0
  %1187 = vmatpush.msra.mxu0 0.0
  %1188 = vmatpush.msra.mxu0 0.0
  %1189 = vmatpush.msra.mxu0 0.0
  %1190 = vmatpush.msra.mxu0 0.0
  %1191 = vmatpush.msra.mxu0 0.0
  %1192 = vmatpush.msra.mxu0 0.0
  %1193 = vmatpush.msra.mxu0 0.0
  %1194 = vmatpush.msra.mxu0 0.0
  %1195 = vmatpush.msra.mxu0 0.0
  %1196 = vmatpush.msra.mxu0 0.0
  %1197 = vmatpush.msra.mxu0 0.0
  %1198 = vmatpush.msra.mxu0 0.0
  %1199 = vmatpush.msra.mxu0 0.0
  %1200 = vmatpush.msra.mxu0 0.0
  %1201 = vmatpush.msra.mxu0 %v1132
  %1202 = vmatmul.f32.gmra.mxu0 %v1123
  %v1203 = vpop.f32.mrf.mxu0
  %v1204 = vadd.f32 0.0, %v1203
  %1205 = vmatmul.f32.gmra.mxu0 %v1126
  %v1206 = vpop.f32.mrf.mxu0
  %v1207 = vadd.f32 0.0, %v1206
  %1208 = vdwg.mxu0
  %1209 = vmatpush.msra.mxu0 0.0
  %1210 = vmatpush.msra.mxu0 0.0
  %1211 = vmatpush.msra.mxu0 0.0
  %1212 = vmatpush.msra.mxu0 0.0
  %1213 = vmatpush.msra.mxu0 0.0
  %1214 = vmatpush.msra.mxu0 0.0
  %1215 = vmatpush.msra.mxu0 0.0
  %1216 = vmatpush.msra.mxu0 0.0
  %1217 = vmatpush.msra.mxu0 0.0
  %1218 = vmatpush.msra.mxu0 0.0
  %1219 = vmatpush.msra.mxu0 0.0
  %1220 = vmatpush.msra.mxu0 0.0
  %1221 = vmatpush.msra.mxu0 0.0
  %1222 = vmatpush.msra.mxu0 0.0
  %1223 = vmatpush.msra.mxu0 0.0
  %1224 = vmatpush.msra.mxu0 %v1134
  %1225 = vmatmul.f32.gmra.mxu0 %v1123
  %v1226 = vpop.f32.mrf.mxu0
  %v1227 = vadd.f32 0.0, %v1226
  %1228 = vmatmul.f32.gmra.mxu0 %v1126
  %v1229 = vpop.f32.mrf.mxu0
  %v1230 = vadd.f32 0.0, %v1229
  %1231 = vdwg.mxu0
  %1232 = vmatpush.msra.mxu0 0.0
  %1233 = vmatpush.msra.mxu0 0.0
  %1234 = vmatpush.msra.mxu0 0.0
  %1235 = vmatpush.msra.mxu0 0.0
  %1236 = vmatpush.msra.mxu0 0.0
  %1237 = vmatpush.msra.mxu0 0.0
  %1238 = vmatpush.msra.mxu0 0.0
  %1239 = vmatpush.msra.mxu0 0.0
  %1240 = vmatpush.msra.mxu0 0.0
  %1241 = vmatpush.msra.mxu0 0.0
  %1242 = vmatpush.msra.mxu0 0.0
  %1243 = vmatpush.msra.mxu0 0.0
  %1244 = vmatpush.msra.mxu0 0.0
  %1245 = vmatpush.msra.mxu0 0.0
  %1246 = vmatpush.msra.mxu0 0.0
  %1247 = vmatpush.msra.mxu0 %v1136
  %1248 = vmatmul.f32.gmra.mxu0 %v1123
  %v1249 = vpop.f32.mrf.mxu0
  %v1250 = vadd.f32 0.0, %v1249
  %1251 = vmatmul.f32.gmra.mxu0 %v1126
  %v1252 = vpop.f32.mrf.mxu0
  %v1253 = vadd.f32 0.0, %v1252
  %1254 = vdwg.mxu0
  %1255 = vmatpush.msra.mxu0 0.0
  %1256 = vmatpush.msra.mxu0 0.0
  %1257 = vmatpush.msra.mxu0 0.0
  %1258 = vmatpush.msra.mxu0 0.0
  %1259 = vmatpush.msra.mxu0 0.0
  %1260 = vmatpush.msra.mxu0 0.0
  %1261 = vmatpush.msra.mxu0 0.0
  %1262 = vmatpush.msra.mxu0 0.0
  %1263 = vmatpush.msra.mxu0 0.0
  %1264 = vmatpush.msra.mxu0 0.0
  %1265 = vmatpush.msra.mxu0 0.0
  %1266 = vmatpush.msra.mxu0 0.0
  %1267 = vmatpush.msra.mxu0 0.0
  %1268 = vmatpush.msra.mxu0 0.0
  %1269 = vmatpush.msra.mxu0 0.0
  %1270 = vmatpush.msra.mxu0 %v1138
  %1271 = vmatmul.f32.gmra.mxu0 %v1123
  %v1272 = vpop.f32.mrf.mxu0
  %v1273 = vadd.f32 0.0, %v1272
  %1274 = vmatmul.f32.gmra.mxu0 %v1126
  %v1275 = vpop.f32.mrf.mxu0
  %v1276 = vadd.f32 0.0, %v1275
  %1277 = vdwg.mxu0
  %v1278 = vadd.f32 %v1064, %v1158
  %v1279 = vadd.f32 %v1065, %v1181
  %v1280 = vadd.f32 %v1066, %v1204
  %v1281 = vadd.f32 %v1067, %v1227
  %v1282 = vadd.f32 %v1068, %v1250
  %v1283 = vadd.f32 %v1069, %v1273
  %v1284 = vadd.f32 %v1070, %v1161
  %v1285 = vadd.f32 %v1071, %v1184
  %v1286 = vadd.f32 %v1072, %v1207
  %v1287 = vadd.f32 %v1073, %v1230
  %v1288 = vadd.f32 %v1074, %v1253
  %v1289 = vadd.f32 %v1075, %v1276
  %v1290 = vld [vmem:[%s0] sm:$0xff]
  %v1291 = vld [vmem:[%s0 + $0x8] sm:$0xff]
  %v1292 = vld [vmem:[%s0 + $0x10] sm:$0xff]
  %v1293 = vld [vmem:[%s0 + $0x18] sm:$0xf]
  %s1294 = scalar_lea.vmem %s1, 96
  %v1295 = vld [vmem:[%s1294] sm:$0xff]
  %v1296 = vld [vmem:[%s1294 + $0x8] sm:$0xff]
  %1301 = vst [vmem:[#allocation1] ss:$2 sm:$0xff] %v1290
  %s1302 = scalar_lea.vmem [#allocation1], 16
  %1303 = vst [vmem:[%s1302] ss:$2 sm:$0xff] %v1291
  %s1304 = scalar_lea.vmem [#allocation1], 32
  %1305 = vst [vmem:[%s1304] ss:$2 sm:$0xff] %v1292
  %s1306 = scalar_lea.vmem [#allocation1], 48
  %1307 = vst [vmem:[%s1306] ss:$2 sm:$0xff] %v1293
  %v1308 = vld.sshfl [vmem:[#allocation1] sm:$0xff pattern:$0x75316420]
  %v1309 = vld.sshfl [vmem:[#allocation1 + $0x8] sm:$0xff pattern:$0x75316420]
  %v1310 = vld.sshfl [vmem:[#allocation1 + $0x10] sm:$0xff pattern:$0x75316420]
  %v1311 = vld.sshfl [vmem:[#allocation1 + $0x18] sm:$0xff pattern:$0x75316420]
  %v1312 = vld.sshfl [vmem:[#allocation1 + $0x20] sm:$0xff pattern:$0x75316420]
  %v1313 = vld.sshfl [vmem:[#allocation1 + $0x28] sm:$0xff pattern:$0x75316420]
  %v1314 = vld.sshfl [vmem:[#allocation1 + $0x30] sm:$0xff pattern:$0x75316420]
  %1315 = vrot.lane.b32.xlu0 %v1308, 92
  %v1316 = vpop.permute.xlu0 %1315
  %1317 = vrot.lane.b32.xlu0 %v1309, 92
  %v1318 = vpop.permute.xlu0 %1317
  %1319 = vrot.lane.b32.xlu0 %v1310, 92
  %v1320 = vpop.permute.xlu0 %1319
  %1321 = vrot.lane.b32.xlu0 %v1311, 92
  %v1322 = vpop.permute.xlu0 %1321
  %1323 = vrot.lane.b32.xlu0 %v1312, 92
  %v1324 = vpop.permute.xlu0 %1323
  %1325 = vrot.lane.b32.xlu0 %v1313, 92
  %v1326 = vpop.permute.xlu0 %1325
  %1327 = vrot.lane.b32.xlu0 %v1314, 92
  %v1328 = vpop.permute.xlu0 %1327
  %vm1329 = vcmask 752640
  %v1330 = vsel %vm1329, %v1316, %v1318
  %v1331 = vsel %vm1329, %v1318, %v1320
  %v1332 = vsel %vm1329, %v1320, %v1322
  %v1333 = vsel %vm1329, %v1322, %v1324
  %v1334 = vsel %vm1329, %v1324, %v1326
  %v1335 = vsel %vm1329, %v1326, %v1328
  %v1337 = vsel %vm50, %v1295, 0
  %v1340 = vsel %vm50, %v1296, 0
  %v1342 = vsel %vm57, %v1330, 0
  %v1344 = vsel %vm57, %v1331, 0
  %v1346 = vsel %vm57, %v1332, 0
  %v1348 = vsel %vm57, %v1333, 0
  %v1350 = vsel %vm57, %v1334, 0
  %v1352 = vsel %vm57, %v1335, 0
  %1354 = vmatpush.msra.mxu0 0.0
  %1355 = vmatpush.msra.mxu0 0.0
  %1356 = vmatpush.msra.mxu0 0.0
  %1357 = vmatpush.msra.mxu0 0.0
  %1358 = vmatpush.msra.mxu0 0.0
  %1359 = vmatpush.msra.mxu0 0.0
  %1360 = vmatpush.msra.mxu0 0.0
  %1361 = vmatpush.msra.mxu0 0.0
  %1362 = vmatpush.msra.mxu0 0.0
  %1363 = vmatpush.msra.mxu0 0.0
  %1364 = vmatpush.msra.mxu0 0.0
  %1365 = vmatpush.msra.mxu0 0.0
  %1366 = vmatpush.msra.mxu0 0.0
  %1367 = vmatpush.msra.mxu0 0.0
  %1368 = vmatpush.msra.mxu0 0.0
  %1369 = vmatpush.msra.mxu0 %v1342
  %1370 = vmatmul.f32.gmra.mxu0 %v1337
  %v1371 = vpop.f32.mrf.mxu0
  %v1372 = vadd.f32 0.0, %v1371
  %1373 = vmatmul.f32.gmra.mxu0 %v1340
  %v1374 = vpop.f32.mrf.mxu0
  %v1375 = vadd.f32 0.0, %v1374
  %1376 = vdwg.mxu0
  %1377 = vmatpush.msra.mxu0 0.0
  %1378 = vmatpush.msra.mxu0 0.0
  %1379 = vmatpush.msra.mxu0 0.0
  %1380 = vmatpush.msra.mxu0 0.0
  %1381 = vmatpush.msra.mxu0 0.0
  %1382 = vmatpush.msra.mxu0 0.0
  %1383 = vmatpush.msra.mxu0 0.0
  %1384 = vmatpush.msra.mxu0 0.0
  %1385 = vmatpush.msra.mxu0 0.0
  %1386 = vmatpush.msra.mxu0 0.0
  %1387 = vmatpush.msra.mxu0 0.0
  %1388 = vmatpush.msra.mxu0 0.0
  %1389 = vmatpush.msra.mxu0 0.0
  %1390 = vmatpush.msra.mxu0 0.0
  %1391 = vmatpush.msra.mxu0 0.0
  %1392 = vmatpush.msra.mxu0 %v1344
  %1393 = vmatmul.f32.gmra.mxu0 %v1337
  %v1394 = vpop.f32.mrf.mxu0
  %v1395 = vadd.f32 0.0, %v1394
  %1396 = vmatmul.f32.gmra.mxu0 %v1340
  %v1397 = vpop.f32.mrf.mxu0
  %v1398 = vadd.f32 0.0, %v1397
  %1399 = vdwg.mxu0
  %1400 = vmatpush.msra.mxu0 0.0
  %1401 = vmatpush.msra.mxu0 0.0
  %1402 = vmatpush.msra.mxu0 0.0
  %1403 = vmatpush.msra.mxu0 0.0
  %1404 = vmatpush.msra.mxu0 0.0
  %1405 = vmatpush.msra.mxu0 0.0
  %1406 = vmatpush.msra.mxu0 0.0
  %1407 = vmatpush.msra.mxu0 0.0
  %1408 = vmatpush.msra.mxu0 0.0
  %1409 = vmatpush.msra.mxu0 0.0
  %1410 = vmatpush.msra.mxu0 0.0
  %1411 = vmatpush.msra.mxu0 0.0
  %1412 = vmatpush.msra.mxu0 0.0
  %1413 = vmatpush.msra.mxu0 0.0
  %1414 = vmatpush.msra.mxu0 0.0
  %1415 = vmatpush.msra.mxu0 %v1346
  %1416 = vmatmul.f32.gmra.mxu0 %v1337
  %v1417 = vpop.f32.mrf.mxu0
  %v1418 = vadd.f32 0.0, %v1417
  %1419 = vmatmul.f32.gmra.mxu0 %v1340
  %v1420 = vpop.f32.mrf.mxu0
  %v1421 = vadd.f32 0.0, %v1420
  %1422 = vdwg.mxu0
  %1423 = vmatpush.msra.mxu0 0.0
  %1424 = vmatpush.msra.mxu0 0.0
  %1425 = vmatpush.msra.mxu0 0.0
  %1426 = vmatpush.msra.mxu0 0.0
  %1427 = vmatpush.msra.mxu0 0.0
  %1428 = vmatpush.msra.mxu0 0.0
  %1429 = vmatpush.msra.mxu0 0.0
  %1430 = vmatpush.msra.mxu0 0.0
  %1431 = vmatpush.msra.mxu0 0.0
  %1432 = vmatpush.msra.mxu0 0.0
  %1433 = vmatpush.msra.mxu0 0.0
  %1434 = vmatpush.msra.mxu0 0.0
  %1435 = vmatpush.msra.mxu0 0.0
  %1436 = vmatpush.msra.mxu0 0.0
  %1437 = vmatpush.msra.mxu0 0.0
  %1438 = vmatpush.msra.mxu0 %v1348
  %1439 = vmatmul.f32.gmra.mxu0 %v1337
  %v1440 = vpop.f32.mrf.mxu0
  %v1441 = vadd.f32 0.0, %v1440
  %1442 = vmatmul.f32.gmra.mxu0 %v1340
  %v1443 = vpop.f32.mrf.mxu0
  %v1444 = vadd.f32 0.0, %v1443
  %1445 = vdwg.mxu0
  %1446 = vmatpush.msra.mxu0 0.0
  %1447 = vmatpush.msra.mxu0 0.0
  %1448 = vmatpush.msra.mxu0 0.0
  %1449 = vmatpush.msra.mxu0 0.0
  %1450 = vmatpush.msra.mxu0 0.0
  %1451 = vmatpush.msra.mxu0 0.0
  %1452 = vmatpush.msra.mxu0 0.0
  %1453 = vmatpush.msra.mxu0 0.0
  %1454 = vmatpush.msra.mxu0 0.0
  %1455 = vmatpush.msra.mxu0 0.0
  %1456 = vmatpush.msra.mxu0 0.0
  %1457 = vmatpush.msra.mxu0 0.0
  %1458 = vmatpush.msra.mxu0 0.0
  %1459 = vmatpush.msra.mxu0 0.0
  %1460 = vmatpush.msra.mxu0 0.0
  %1461 = vmatpush.msra.mxu0 %v1350
  %1462 = vmatmul.f32.gmra.mxu0 %v1337
  %v1463 = vpop.f32.mrf.mxu0
  %v1464 = vadd.f32 0.0, %v1463
  %1465 = vmatmul.f32.gmra.mxu0 %v1340
  %v1466 = vpop.f32.mrf.mxu0
  %v1467 = vadd.f32 0.0, %v1466
  %1468 = vdwg.mxu0
  %1469 = vmatpush.msra.mxu0 0.0
  %1470 = vmatpush.msra.mxu0 0.0
  %1471 = vmatpush.msra.mxu0 0.0
  %1472 = vmatpush.msra.mxu0 0.0
  %1473 = vmatpush.msra.mxu0 0.0
  %1474 = vmatpush.msra.mxu0 0.0
  %1475 = vmatpush.msra.mxu0 0.0
  %1476 = vmatpush.msra.mxu0 0.0
  %1477 = vmatpush.msra.mxu0 0.0
  %1478 = vmatpush.msra.mxu0 0.0
  %1479 = vmatpush.msra.mxu0 0.0
  %1480 = vmatpush.msra.mxu0 0.0
  %1481 = vmatpush.msra.mxu0 0.0
  %1482 = vmatpush.msra.mxu0 0.0
  %1483 = vmatpush.msra.mxu0 0.0
  %1484 = vmatpush.msra.mxu0 %v1352
  %1485 = vmatmul.f32.gmra.mxu0 %v1337
  %v1486 = vpop.f32.mrf.mxu0
  %v1487 = vadd.f32 0.0, %v1486
  %1488 = vmatmul.f32.gmra.mxu0 %v1340
  %v1489 = vpop.f32.mrf.mxu0
  %v1490 = vadd.f32 0.0, %v1489
  %1491 = vdwg.mxu0
  %v1492 = vadd.f32 %v1278, %v1372
  %v1493 = vadd.f32 %v1279, %v1395
  %v1494 = vadd.f32 %v1280, %v1418
  %v1495 = vadd.f32 %v1281, %v1441
  %v1496 = vadd.f32 %v1282, %v1464
  %v1497 = vadd.f32 %v1283, %v1487
  %v1498 = vadd.f32 %v1284, %v1375
  %v1499 = vadd.f32 %v1285, %v1398
  %v1500 = vadd.f32 %v1286, %v1421
  %v1501 = vadd.f32 %v1287, %v1444
  %v1502 = vadd.f32 %v1288, %v1467
  %v1503 = vadd.f32 %v1289, %v1490
  %v1504 = vld [vmem:[%s0] sm:$0xff]
  %v1505 = vld [vmem:[%s0 + $0x8] sm:$0xff]
  %v1506 = vld [vmem:[%s0 + $0x10] sm:$0xff]
  %v1507 = vld [vmem:[%s0 + $0x18] sm:$0xf]
  %s1508 = scalar_lea.vmem %s1, 112
  %v1509 = vld [vmem:[%s1508] sm:$0xff]
  %v1510 = vld [vmem:[%s1508 + $0x8] sm:$0xff]
  %1515 = vst [vmem:[#allocation1] ss:$2 sm:$0xff] %v1504
  %s1516 = scalar_lea.vmem [#allocation1], 16
  %1517 = vst [vmem:[%s1516] ss:$2 sm:$0xff] %v1505
  %s1518 = scalar_lea.vmem [#allocation1], 32
  %1519 = vst [vmem:[%s1518] ss:$2 sm:$0xff] %v1506
  %s1520 = scalar_lea.vmem [#allocation1], 48
  %1521 = vst [vmem:[%s1520] ss:$2 sm:$0xff] %v1507
  %v1522 = vld.sshfl [vmem:[#allocation1] sm:$0xff pattern:$0x75316420]
  %v1523 = vld.sshfl [vmem:[#allocation1 + $0x8] sm:$0xff pattern:$0x75316420]
  %v1524 = vld.sshfl [vmem:[#allocation1 + $0x10] sm:$0xff pattern:$0x75316420]
  %v1525 = vld.sshfl [vmem:[#allocation1 + $0x18] sm:$0xff pattern:$0x75316420]
  %v1526 = vld.sshfl [vmem:[#allocation1 + $0x20] sm:$0xff pattern:$0x75316420]
  %v1527 = vld.sshfl [vmem:[#allocation1 + $0x28] sm:$0xff pattern:$0x75316420]
  %v1528 = vld.sshfl [vmem:[#allocation1 + $0x30] sm:$0xff pattern:$0x75316420]
  %1529 = vrot.lane.b32.xlu0 %v1522, 91
  %v1530 = vpop.permute.xlu0 %1529
  %1531 = vrot.lane.b32.xlu0 %v1523, 91
  %v1532 = vpop.permute.xlu0 %1531
  %1533 = vrot.lane.b32.xlu0 %v1524, 91
  %v1534 = vpop.permute.xlu0 %1533
  %1535 = vrot.lane.b32.xlu0 %v1525, 91
  %v1536 = vpop.permute.xlu0 %1535
  %1537 = vrot.lane.b32.xlu0 %v1526, 91
  %v1538 = vpop.permute.xlu0 %1537
  %1539 = vrot.lane.b32.xlu0 %v1527, 91
  %v1540 = vpop.permute.xlu0 %1539
  %1541 = vrot.lane.b32.xlu0 %v1528, 91
  %v1542 = vpop.permute.xlu0 %1541
  %vm1543 = vcmask 744448
  %v1544 = vsel %vm1543, %v1530, %v1532
  %v1545 = vsel %vm1543, %v1532, %v1534
  %v1546 = vsel %vm1543, %v1534, %v1536
  %v1547 = vsel %vm1543, %v1536, %v1538
  %v1548 = vsel %vm1543, %v1538, %v1540
  %v1549 = vsel %vm1543, %v1540, %v1542
  %v1551 = vsel %vm50, %v1509, 0
  %v1554 = vsel %vm50, %v1510, 0
  %v1556 = vsel %vm57, %v1544, 0
  %v1558 = vsel %vm57, %v1545, 0
  %v1560 = vsel %vm57, %v1546, 0
  %v1562 = vsel %vm57, %v1547, 0
  %v1564 = vsel %vm57, %v1548, 0
  %v1566 = vsel %vm57, %v1549, 0
  %1568 = vmatpush.msra.mxu0 0.0
  %1569 = vmatpush.msra.mxu0 0.0
  %1570 = vmatpush.msra.mxu0 0.0
  %1571 = vmatpush.msra.mxu0 0.0
  %1572 = vmatpush.msra.mxu0 0.0
  %1573 = vmatpush.msra.mxu0 0.0
  %1574 = vmatpush.msra.mxu0 0.0
  %1575 = vmatpush.msra.mxu0 0.0
  %1576 = vmatpush.msra.mxu0 0.0
  %1577 = vmatpush.msra.mxu0 0.0
  %1578 = vmatpush.msra.mxu0 0.0
  %1579 = vmatpush.msra.mxu0 0.0
  %1580 = vmatpush.msra.mxu0 0.0
  %1581 = vmatpush.msra.mxu0 0.0
  %1582 = vmatpush.msra.mxu0 0.0
  %1583 = vmatpush.msra.mxu0 %v1556
  %1584 = vmatmul.f32.gmra.mxu0 %v1551
  %v1585 = vpop.f32.mrf.mxu0
  %v1586 = vadd.f32 0.0, %v1585
  %1587 = vmatmul.f32.gmra.mxu0 %v1554
  %v1588 = vpop.f32.mrf.mxu0
  %v1589 = vadd.f32 0.0, %v1588
  %1590 = vdwg.mxu0
  %1591 = vmatpush.msra.mxu0 0.0
  %1592 = vmatpush.msra.mxu0 0.0
  %1593 = vmatpush.msra.mxu0 0.0
  %1594 = vmatpush.msra.mxu0 0.0
  %1595 = vmatpush.msra.mxu0 0.0
  %1596 = vmatpush.msra.mxu0 0.0
  %1597 = vmatpush.msra.mxu0 0.0
  %1598 = vmatpush.msra.mxu0 0.0
  %1599 = vmatpush.msra.mxu0 0.0
  %1600 = vmatpush.msra.mxu0 0.0
  %1601 = vmatpush.msra.mxu0 0.0
  %1602 = vmatpush.msra.mxu0 0.0
  %1603 = vmatpush.msra.mxu0 0.0
  %1604 = vmatpush.msra.mxu0 0.0
  %1605 = vmatpush.msra.mxu0 0.0
  %1606 = vmatpush.msra.mxu0 %v1558
  %1607 = vmatmul.f32.gmra.mxu0 %v1551
  %v1608 = vpop.f32.mrf.mxu0
  %v1609 = vadd.f32 0.0, %v1608
  %1610 = vmatmul.f32.gmra.mxu0 %v1554
  %v1611 = vpop.f32.mrf.mxu0
  %v1612 = vadd.f32 0.0, %v1611
  %1613 = vdwg.mxu0
  %1614 = vmatpush.msra.mxu0 0.0
  %1615 = vmatpush.msra.mxu0 0.0
  %1616 = vmatpush.msra.mxu0 0.0
  %1617 = vmatpush.msra.mxu0 0.0
  %1618 = vmatpush.msra.mxu0 0.0
  %1619 = vmatpush.msra.mxu0 0.0
  %1620 = vmatpush.msra.mxu0 0.0
  %1621 = vmatpush.msra.mxu0 0.0
  %1622 = vmatpush.msra.mxu0 0.0
  %1623 = vmatpush.msra.mxu0 0.0
  %1624 = vmatpush.msra.mxu0 0.0
  %1625 = vmatpush.msra.mxu0 0.0
  %1626 = vmatpush.msra.mxu0 0.0
  %1627 = vmatpush.msra.mxu0 0.0
  %1628 = vmatpush.msra.mxu0 0.0
  %1629 = vmatpush.msra.mxu0 %v1560
  %1630 = vmatmul.f32.gmra.mxu0 %v1551
  %v1631 = vpop.f32.mrf.mxu0
  %v1632 = vadd.f32 0.0, %v1631
  %1633 = vmatmul.f32.gmra.mxu0 %v1554
  %v1634 = vpop.f32.mrf.mxu0
  %v1635 = vadd.f32 0.0, %v1634
  %1636 = vdwg.mxu0
  %1637 = vmatpush.msra.mxu0 0.0
  %1638 = vmatpush.msra.mxu0 0.0
  %1639 = vmatpush.msra.mxu0 0.0
  %1640 = vmatpush.msra.mxu0 0.0
  %1641 = vmatpush.msra.mxu0 0.0
  %1642 = vmatpush.msra.mxu0 0.0
  %1643 = vmatpush.msra.mxu0 0.0
  %1644 = vmatpush.msra.mxu0 0.0
  %1645 = vmatpush.msra.mxu0 0.0
  %1646 = vmatpush.msra.mxu0 0.0
  %1647 = vmatpush.msra.mxu0 0.0
  %1648 = vmatpush.msra.mxu0 0.0
  %1649 = vmatpush.msra.mxu0 0.0
  %1650 = vmatpush.msra.mxu0 0.0
  %1651 = vmatpush.msra.mxu0 0.0
  %1652 = vmatpush.msra.mxu0 %v1562
  %1653 = vmatmul.f32.gmra.mxu0 %v1551
  %v1654 = vpop.f32.mrf.mxu0
  %v1655 = vadd.f32 0.0, %v1654
  %1656 = vmatmul.f32.gmra.mxu0 %v1554
  %v1657 = vpop.f32.mrf.mxu0
  %v1658 = vadd.f32 0.0, %v1657
  %1659 = vdwg.mxu0
  %1660 = vmatpush.msra.mxu0 0.0
  %1661 = vmatpush.msra.mxu0 0.0
  %1662 = vmatpush.msra.mxu0 0.0
  %1663 = vmatpush.msra.mxu0 0.0
  %1664 = vmatpush.msra.mxu0 0.0
  %1665 = vmatpush.msra.mxu0 0.0
  %1666 = vmatpush.msra.mxu0 0.0
  %1667 = vmatpush.msra.mxu0 0.0
  %1668 = vmatpush.msra.mxu0 0.0
  %1669 = vmatpush.msra.mxu0 0.0
  %1670 = vmatpush.msra.mxu0 0.0
  %1671 = vmatpush.msra.mxu0 0.0
  %1672 = vmatpush.msra.mxu0 0.0
  %1673 = vmatpush.msra.mxu0 0.0
  %1674 = vmatpush.msra.mxu0 0.0
  %1675 = vmatpush.msra.mxu0 %v1564
  %1676 = vmatmul.f32.gmra.mxu0 %v1551
  %v1677 = vpop.f32.mrf.mxu0
  %v1678 = vadd.f32 0.0, %v1677
  %1679 = vmatmul.f32.gmra.mxu0 %v1554
  %v1680 = vpop.f32.mrf.mxu0
  %v1681 = vadd.f32 0.0, %v1680
  %1682 = vdwg.mxu0
  %1683 = vmatpush.msra.mxu0 0.0
  %1684 = vmatpush.msra.mxu0 0.0
  %1685 = vmatpush.msra.mxu0 0.0
  %1686 = vmatpush.msra.mxu0 0.0
  %1687 = vmatpush.msra.mxu0 0.0
  %1688 = vmatpush.msra.mxu0 0.0
  %1689 = vmatpush.msra.mxu0 0.0
  %1690 = vmatpush.msra.mxu0 0.0
  %1691 = vmatpush.msra.mxu0 0.0
  %1692 = vmatpush.msra.mxu0 0.0
  %1693 = vmatpush.msra.mxu0 0.0
  %1694 = vmatpush.msra.mxu0 0.0
  %1695 = vmatpush.msra.mxu0 0.0
  %1696 = vmatpush.msra.mxu0 0.0
  %1697 = vmatpush.msra.mxu0 0.0
  %1698 = vmatpush.msra.mxu0 %v1566
  %1699 = vmatmul.f32.gmra.mxu0 %v1551
  %v1700 = vpop.f32.mrf.mxu0
  %v1701 = vadd.f32 0.0, %v1700
  %1702 = vmatmul.f32.gmra.mxu0 %v1554
  %v1703 = vpop.f32.mrf.mxu0
  %v1704 = vadd.f32 0.0, %v1703
  %1705 = vdwg.mxu0
  %v1706 = vadd.f32 %v1492, %v1586
  %v1707 = vadd.f32 %v1493, %v1609
  %v1708 = vadd.f32 %v1494, %v1632
  %v1709 = vadd.f32 %v1495, %v1655
  %v1710 = vadd.f32 %v1496, %v1678
  %v1711 = vadd.f32 %v1497, %v1701
  %v1712 = vadd.f32 %v1498, %v1589
  %v1713 = vadd.f32 %v1499, %v1612
  %v1714 = vadd.f32 %v1500, %v1635
  %v1715 = vadd.f32 %v1501, %v1658
  %v1716 = vadd.f32 %v1502, %v1681
  %v1717 = vadd.f32 %v1503, %v1704
  %v1718 = vld [vmem:[%s0] sm:$0xff]
  %v1719 = vld [vmem:[%s0 + $0x8] sm:$0xff]
  %v1720 = vld [vmem:[%s0 + $0x10] sm:$0xff]
  %v1721 = vld [vmem:[%s0 + $0x18] sm:$0xf]
  %s1722 = scalar_lea.vmem %s1, 128
  %v1723 = vld [vmem:[%s1722] sm:$0xff]
  %v1724 = vld [vmem:[%s1722 + $0x8] sm:$0xff]
  %1729 = vst [vmem:[#allocation1] ss:$2 sm:$0xff] %v1718
  %s1730 = scalar_lea.vmem [#allocation1], 16
  %1731 = vst [vmem:[%s1730] ss:$2 sm:$0xff] %v1719
  %s1732 = scalar_lea.vmem [#allocation1], 32
  %1733 = vst [vmem:[%s1732] ss:$2 sm:$0xff] %v1720
  %s1734 = scalar_lea.vmem [#allocation1], 48
  %1735 = vst [vmem:[%s1734] ss:$2 sm:$0xff] %v1721
  %v1736 = vld.sshfl [vmem:[#allocation1] sm:$0xff pattern:$0x75316420]
  %v1737 = vld.sshfl [vmem:[#allocation1 + $0x8] sm:$0xff pattern:$0x75316420]
  %v1738 = vld.sshfl [vmem:[#allocation1 + $0x10] sm:$0xff pattern:$0x75316420]
  %v1739 = vld.sshfl [vmem:[#allocation1 + $0x18] sm:$0xff pattern:$0x75316420]
  %v1740 = vld.sshfl [vmem:[#allocation1 + $0x20] sm:$0xff pattern:$0x75316420]
  %v1741 = vld.sshfl [vmem:[#allocation1 + $0x28] sm:$0xff pattern:$0x75316420]
  %v1742 = vld.sshfl [vmem:[#allocation1 + $0x30] sm:$0xff pattern:$0x75316420]
  %1743 = vrot.lane.b32.xlu0 %v1736, 90
  %v1744 = vpop.permute.xlu0 %1743
  %1745 = vrot.lane.b32.xlu0 %v1737, 90
  %v1746 = vpop.permute.xlu0 %1745
  %1747 = vrot.lane.b32.xlu0 %v1738, 90
  %v1748 = vpop.permute.xlu0 %1747
  %1749 = vrot.lane.b32.xlu0 %v1739, 90
  %v1750 = vpop.permute.xlu0 %1749
  %1751 = vrot.lane.b32.xlu0 %v1740, 90
  %v1752 = vpop.permute.xlu0 %1751
  %1753 = vrot.lane.b32.xlu0 %v1741, 90
  %v1754 = vpop.permute.xlu0 %1753
  %1755 = vrot.lane.b32.xlu0 %v1742, 90
  %v1756 = vpop.permute.xlu0 %1755
  %vm1757 = vcmask 736256
  %v1758 = vsel %vm1757, %v1744, %v1746
  %v1759 = vsel %vm1757, %v1746, %v1748
  %v1760 = vsel %vm1757, %v1748, %v1750
  %v1761 = vsel %vm1757, %v1750, %v1752
  %v1762 = vsel %vm1757, %v1752, %v1754
  %v1763 = vsel %vm1757, %v1754, %v1756
  %v1765 = vsel %vm50, %v1723, 0
  %v1768 = vsel %vm50, %v1724, 0
  %v1770 = vsel %vm57, %v1758, 0
  %v1772 = vsel %vm57, %v1759, 0
  %v1774 = vsel %vm57, %v1760, 0
  %v1776 = vsel %vm57, %v1761, 0
  %v1778 = vsel %vm57, %v1762, 0
  %v1780 = vsel %vm57, %v1763, 0
  %1782 = vmatpush.msra.mxu0 0.0
  %1783 = vmatpush.msra.mxu0 0.0
  %1784 = vmatpush.msra.mxu0 0.0
  %1785 = vmatpush.msra.mxu0 0.0
  %1786 = vmatpush.msra.mxu0 0.0
  %1787 = vmatpush.msra.mxu0 0.0
  %1788 = vmatpush.msra.mxu0 0.0
  %1789 = vmatpush.msra.mxu0 0.0
  %1790 = vmatpush.msra.mxu0 0.0
  %1791 = vmatpush.msra.mxu0 0.0
  %1792 = vmatpush.msra.mxu0 0.0
  %1793 = vmatpush.msra.mxu0 0.0
  %1794 = vmatpush.msra.mxu0 0.0
  %1795 = vmatpush.msra.mxu0 0.0
  %1796 = vmatpush.msra.mxu0 0.0
  %1797 = vmatpush.msra.mxu0 %v1770
  %1798 = vmatmul.f32.gmra.mxu0 %v1765
  %v1799 = vpop.f32.mrf.mxu0
  %v1800 = vadd.f32 0.0, %v1799
  %1801 = vmatmul.f32.gmra.mxu0 %v1768
  %v1802 = vpop.f32.mrf.mxu0
  %v1803 = vadd.f32 0.0, %v1802
  %1804 = vdwg.mxu0
  %1805 = vmatpush.msra.mxu0 0.0
  %1806 = vmatpush.msra.mxu0 0.0
  %1807 = vmatpush.msra.mxu0 0.0
  %1808 = vmatpush.msra.mxu0 0.0
  %1809 = vmatpush.msra.mxu0 0.0
  %1810 = vmatpush.msra.mxu0 0.0
  %1811 = vmatpush.msra.mxu0 0.0
  %1812 = vmatpush.msra.mxu0 0.0
  %1813 = vmatpush.msra.mxu0 0.0
  %1814 = vmatpush.msra.mxu0 0.0
  %1815 = vmatpush.msra.mxu0 0.0
  %1816 = vmatpush.msra.mxu0 0.0
  %1817 = vmatpush.msra.mxu0 0.0
  %1818 = vmatpush.msra.mxu0 0.0
  %1819 = vmatpush.msra.mxu0 0.0
  %1820 = vmatpush.msra.mxu0 %v1772
  %1821 = vmatmul.f32.gmra.mxu0 %v1765
  %v1822 = vpop.f32.mrf.mxu0
  %v1823 = vadd.f32 0.0, %v1822
  %1824 = vmatmul.f32.gmra.mxu0 %v1768
  %v1825 = vpop.f32.mrf.mxu0
  %v1826 = vadd.f32 0.0, %v1825
  %1827 = vdwg.mxu0
  %1828 = vmatpush.msra.mxu0 0.0
  %1829 = vmatpush.msra.mxu0 0.0
  %1830 = vmatpush.msra.mxu0 0.0
  %1831 = vmatpush.msra.mxu0 0.0
  %1832 = vmatpush.msra.mxu0 0.0
  %1833 = vmatpush.msra.mxu0 0.0
  %1834 = vmatpush.msra.mxu0 0.0
  %1835 = vmatpush.msra.mxu0 0.0
  %1836 = vmatpush.msra.mxu0 0.0
  %1837 = vmatpush.msra.mxu0 0.0
  %1838 = vmatpush.msra.mxu0 0.0
  %1839 = vmatpush.msra.mxu0 0.0
  %1840 = vmatpush.msra.mxu0 0.0
  %1841 = vmatpush.msra.mxu0 0.0
  %1842 = vmatpush.msra.mxu0 0.0
  %1843 = vmatpush.msra.mxu0 %v1774
  %1844 = vmatmul.f32.gmra.mxu0 %v1765
  %v1845 = vpop.f32.mrf.mxu0
  %v1846 = vadd.f32 0.0, %v1845
  %1847 = vmatmul.f32.gmra.mxu0 %v1768
  %v1848 = vpop.f32.mrf.mxu0
  %v1849 = vadd.f32 0.0, %v1848
  %1850 = vdwg.mxu0
  %1851 = vmatpush.msra.mxu0 0.0
  %1852 = vmatpush.msra.mxu0 0.0
  %1853 = vmatpush.msra.mxu0 0.0
  %1854 = vmatpush.msra.mxu0 0.0
  %1855 = vmatpush.msra.mxu0 0.0
  %1856 = vmatpush.msra.mxu0 0.0
  %1857 = vmatpush.msra.mxu0 0.0
  %1858 = vmatpush.msra.mxu0 0.0
  %1859 = vmatpush.msra.mxu0 0.0
  %1860 = vmatpush.msra.mxu0 0.0
  %1861 = vmatpush.msra.mxu0 0.0
  %1862 = vmatpush.msra.mxu0 0.0
  %1863 = vmatpush.msra.mxu0 0.0
  %1864 = vmatpush.msra.mxu0 0.0
  %1865 = vmatpush.msra.mxu0 0.0
  %1866 = vmatpush.msra.mxu0 %v1776
  %1867 = vmatmul.f32.gmra.mxu0 %v1765
  %v1868 = vpop.f32.mrf.mxu0
  %v1869 = vadd.f32 0.0, %v1868
  %1870 = vmatmul.f32.gmra.mxu0 %v1768
  %v1871 = vpop.f32.mrf.mxu0
  %v1872 = vadd.f32 0.0, %v1871
  %1873 = vdwg.mxu0
  %1874 = vmatpush.msra.mxu0 0.0
  %1875 = vmatpush.msra.mxu0 0.0
  %1876 = vmatpush.msra.mxu0 0.0
  %1877 = vmatpush.msra.mxu0 0.0
  %1878 = vmatpush.msra.mxu0 0.0
  %1879 = vmatpush.msra.mxu0 0.0
  %1880 = vmatpush.msra.mxu0 0.0
  %1881 = vmatpush.msra.mxu0 0.0
  %1882 = vmatpush.msra.mxu0 0.0
  %1883 = vmatpush.msra.mxu0 0.0
  %1884 = vmatpush.msra.mxu0 0.0
  %1885 = vmatpush.msra.mxu0 0.0
  %1886 = vmatpush.msra.mxu0 0.0
  %1887 = vmatpush.msra.mxu0 0.0
  %1888 = vmatpush.msra.mxu0 0.0
  %1889 = vmatpush.msra.mxu0 %v1778
  %1890 = vmatmul.f32.gmra.mxu0 %v1765
  %v1891 = vpop.f32.mrf.mxu0
  %v1892 = vadd.f32 0.0, %v1891
  %1893 = vmatmul.f32.gmra.mxu0 %v1768
  %v1894 = vpop.f32.mrf.mxu0
  %v1895 = vadd.f32 0.0, %v1894
  %1896 = vdwg.mxu0
  %1897 = vmatpush.msra.mxu0 0.0
  %1898 = vmatpush.msra.mxu0 0.0
  %1899 = vmatpush.msra.mxu0 0.0
  %1900 = vmatpush.msra.mxu0 0.0
  %1901 = vmatpush.msra.mxu0 0.0
  %1902 = vmatpush.msra.mxu0 0.0
  %1903 = vmatpush.msra.mxu0 0.0
  %1904 = vmatpush.msra.mxu0 0.0
  %1905 = vmatpush.msra.mxu0 0.0
  %1906 = vmatpush.msra.mxu0 0.0
  %1907 = vmatpush.msra.mxu0 0.0
  %1908 = vmatpush.msra.mxu0 0.0
  %1909 = vmatpush.msra.mxu0 0.0
  %1910 = vmatpush.msra.mxu0 0.0
  %1911 = vmatpush.msra.mxu0 0.0
  %1912 = vmatpush.msra.mxu0 %v1780
  %1913 = vmatmul.f32.gmra.mxu0 %v1765
  %v1914 = vpop.f32.mrf.mxu0
  %v1915 = vadd.f32 0.0, %v1914
  %1916 = vmatmul.f32.gmra.mxu0 %v1768
  %v1917 = vpop.f32.mrf.mxu0
  %v1918 = vadd.f32 0.0, %v1917
  %1919 = vdwg.mxu0
  %v1920 = vadd.f32 %v1706, %v1800
  %v1921 = vadd.f32 %v1707, %v1823
  %v1922 = vadd.f32 %v1708, %v1846
  %v1923 = vadd.f32 %v1709, %v1869
  %v1924 = vadd.f32 %v1710, %v1892
  %v1925 = vadd.f32 %v1711, %v1915
  %v1926 = vadd.f32 %v1712, %v1803
  %v1927 = vadd.f32 %v1713, %v1826
  %v1928 = vadd.f32 %v1714, %v1849
  %v1929 = vadd.f32 %v1715, %v1872
  %v1930 = vadd.f32 %v1716, %v1895
  %v1931 = vadd.f32 %v1717, %v1918
  %vm1932 = vcmp.ge.f32.partialorder %v1920, 0.0
  %vm1933 = vcmp.ge.f32.partialorder %v1921, 0.0
  %vm1934 = vcmp.ge.f32.partialorder %v1922, 0.0
  %vm1935 = vcmp.ge.f32.partialorder %v1923, 0.0
  %vm1936 = vcmp.ge.f32.partialorder %v1924, 0.0
  %vm1937 = vcmp.ge.f32.partialorder %v1925, 0.0
  %vm1938 = vcmp.ge.f32.partialorder %v1926, 0.0
  %vm1939 = vcmp.ge.f32.partialorder %v1927, 0.0
  %vm1940 = vcmp.ge.f32.partialorder %v1928, 0.0
  %vm1941 = vcmp.ge.f32.partialorder %v1929, 0.0
  %vm1942 = vcmp.ge.f32.partialorder %v1930, 0.0
  %vm1943 = vcmp.ge.f32.partialorder %v1931, 0.0
  %v1944 = vstv %s18
  %v1945 = vmul.f32 %v1944, %v1920
  %v1946 = vmul.f32 %v1944, %v1921
  %v1947 = vmul.f32 %v1944, %v1922
  %v1948 = vmul.f32 %v1944, %v1923
  %v1949 = vmul.f32 %v1944, %v1924
  %v1950 = vmul.f32 %v1944, %v1925
  %v1951 = vmul.f32 %v1944, %v1926
  %v1952 = vmul.f32 %v1944, %v1927
  %v1953 = vmul.f32 %v1944, %v1928
  %v1954 = vmul.f32 %v1944, %v1929
  %v1955 = vmul.f32 %v1944, %v1930
  %v1956 = vmul.f32 %v1944, %v1931
  %v1957 = vsel %vm1932, %v1920, %v1945
  %v1958 = vsel %vm1933, %v1921, %v1946
  %v1959 = vsel %vm1934, %v1922, %v1947
  %v1960 = vsel %vm1935, %v1923, %v1948
  %v1961 = vsel %vm1936, %v1924, %v1949
  %v1962 = vsel %vm1937, %v1925, %v1950
  %v1963 = vsel %vm1938, %v1926, %v1951
  %v1964 = vsel %vm1939, %v1927, %v1952
  %v1965 = vsel %vm1940, %v1928, %v1953
  %v1966 = vsel %vm1941, %v1929, %v1954
  %v1967 = vsel %vm1942, %v1930, %v1955
  %v1968 = vsel %vm1943, %v1931, %v1956
  %1969 = vst [vmem:[%s4] sm:$0xff] %v1957
  %1970 = vst [vmem:[%s4 + $0x8] sm:$0xff] %v1958
  %1971 = vst [vmem:[%s4 + $0x10] sm:$0xff] %v1959
  %1972 = vst [vmem:[%s4 + $0x18] sm:$0xff] %v1963
  %1973 = vst [vmem:[%s4 + $0x20] sm:$0xff] %v1964
  %1974 = vst [vmem:[%s4 + $0x28] sm:$0xff] %v1965
  %s1975 = scalar_lea.vmem %s4, 48
  %1976 = vst [vmem:[%s1975] sm:$0xff] %v1960
  %1977 = vst [vmem:[%s1975 + $0x8] sm:$0xff] %v1961
  %1978 = vst [vmem:[%s1975 + $0x10] sm:$0xff] %v1962
  %1979 = vst [vmem:[%s1975 + $0x18] sm:$0xff] %v1966
  %1980 = vst [vmem:[%s1975 + $0x20] sm:$0xff] %v1967
  %1981 = vst [vmem:[%s1975 + $0x28] sm:$0xff] %v1968
  // Predicated region
  $region18: #{pixel_shuffle_block.1} parent=0 // pred_check
    _
  $region19: #{pixel_shuffle_block.1} parent=0 // pred_check_branch
    %1983 = sbr.rel (0) target = $region21
  $region20: #{pixel_shuffle_block.1} parent=0 // pred_region
    _
  $region21: #{pixel_shuffle_block.1} parent=0 // pred_fallthru
    _
  // Predicated region
  $region22: #{pixel_shuffle_block.1} parent=0 // pred_check
    _
  $region23: #{pixel_shuffle_block.1} parent=0 // pred_check_branch
    %1985 = sbr.rel (0) target = $region25
  $region24: #{pixel_shuffle_block.1} parent=0 // pred_region
    _
  $region25: #{pixel_shuffle_block.1} parent=0 // pred_fallthru
    _

</llo_original>
